<compile_context>
chip_gen: v6e
topology: v6e:2x2x1
jax: 0.10.0
libtpu: 0.0.40
codegen_flags: <defaults>
</compile_context>

<pallas_src>
import jax
import jax.numpy as jnp
from jax import lax
from jax.experimental import pallas as pl
from jax.experimental.pallas import tpu as pltpu

LANE = 128
SUBLANE = 8


def _round_up(x, m):
    return (x + m - 1) // m * m


# ---------------------------------------------------------------------------
# Fused kernel: serial GRU recurrence over a block of timesteps, with the
# latent projection + reparameterization fused into the final grid step.
#   gi_ref   : (T_BLK, BP, 3*HP) bf16  hoisted input projection (+ folded biases)
#   whh_ref  : (HP, 3*HP)        bf16  recurrent weights, gate-blocked [r|z|n]
#   bhn_ref  : (1, HP)           f32   hidden bias of the n-gate (the only one
#                                      that cannot be folded: it is gated by r)
#   wproj_ref: (HP, 2*LP)        bf16  [W_mu | W_sigma]
#   bproj_ref: (1, 2*LP)         f32   [b_mu | b_sigma]
#   eps_ref  : (BP, LP)          f32   reparameterization noise
#   out_ref  : (BP, 3*LP)        f32   [z | mu | log_var] lane-dense slab
#   h_ref    : (BP, HP)          f32   VMEM scratch; persists across grid steps
# ---------------------------------------------------------------------------
def encoder_fused_kernel(gi_ref, whh_ref, bhn_ref, wproj_ref, bproj_ref,
                         eps_ref, out_ref, h_ref):
    hp = h_ref.shape[-1]
    t_blk = gi_ref.shape[0]

    @pl.when(pl.program_id(0) == 0)
    def _():
        h_ref[...] = jnp.zeros_like(h_ref)
        out_ref[...] = jnp.zeros_like(out_ref)

    # Hoisted loads (loop-invariant).
    w_hh = whh_ref[...]
    b_hn = bhn_ref[...]                                   # (1, HP), broadcast

    def step(t, carry):
        gi = gi_ref[t].astype(jnp.float32)                # (BP, 3*HP)
        h = h_ref[...]                                    # (BP, HP)   f32
        # Only the recurrent matmul remains on the serial chain:
        # bf16 operands, f32 accumulation.
        gh = jnp.dot(h.astype(jnp.bfloat16), w_hh,
                     preferred_element_type=jnp.float32)  # (BP, 3*HP)
        # 128-lane-aligned gate slices -> whole-vreg selects.
        r = jax.nn.sigmoid(gi[:, :hp] + gh[:, :hp])
        zg = jax.nn.sigmoid(gi[:, hp:2 * hp] + gh[:, hp:2 * hp])
        n = jnp.tanh(gi[:, 2 * hp:] + r * (gh[:, 2 * hp:] + b_hn))
        h_ref[...] = (1.0 - zg) * n + zg * h
        return carry

    # Serial dependence: unrolling past a small window buys nothing; keep the
    # instruction footprint bounded for large t_blk.
    lax.fori_loop(0, t_blk, step, 0, unroll=min(t_blk, 8))

    # Latent projection fused into the final grid step (no second kernel, no
    # HBM round-trip of the final hidden state).
    @pl.when(pl.program_id(0) == pl.num_programs(0) - 1)
    def _():
        lp = eps_ref.shape[-1]
        proj = jnp.dot(h_ref[...].astype(jnp.bfloat16), wproj_ref[...],
                       preferred_element_type=jnp.float32) + bproj_ref[...]
        mu = proj[:, :lp]
        lv = proj[:, lp:]
        z = mu + eps_ref[...] * jnp.exp(lv * 0.5)
        out_ref[:, :lp] = z
        out_ref[:, lp:2 * lp] = mu
        out_ref[:, 2 * lp:] = lv


# ---------------------------------------------------------------------------
# One-time layout transform (NOT in the per-call hot path): padding,
# gate-blocking, bias folding, and the hoisted input projection table.
# ---------------------------------------------------------------------------
def prepare_params(params):
    emb, w_ih, w_hh, b_ih, b_hh, w_mu, b_mu, w_sig, b_sig = params
    H = emb.shape[1]
    L = w_mu.shape[1]
    HP = _round_up(H, LANE)
    LP = _round_up(L, LANE)
    f32 = jnp.float32

    def pad_gate_w(w):       # (H, 3H) -> (HP, 3*HP), gates [r|z|n] each padded
        w3 = w.reshape(H, 3, H)
        return jnp.zeros((HP, 3, HP), f32).at[:H, :, :H].set(w3).reshape(HP, 3 * HP)

    def pad_gate_b(b):       # (1, 3H) -> (3, HP)
        return jnp.zeros((3, HP), f32).at[:, :H].set(b.reshape(3, H))

    w_hh_p = pad_gate_w(w_hh).astype(jnp.bfloat16)                # (HP, 3HP)
    b_ih3 = pad_gate_b(b_ih)
    b_hh3 = pad_gate_b(b_hh)

    # b_ih fully folded into the hoisted input projection; b_hh_r / b_hh_z are
    # also foldable (added before the sigmoid). Only b_hh_n stays in the loop.
    b_fold = jnp.concatenate(
        [b_ih3[0] + b_hh3[0], b_ih3[1] + b_hh3[1], b_ih3[2]], axis=0
    ).reshape(1, 3 * HP)
    b_hn = b_hh3[2].reshape(1, HP)                                # (1, HP)

    # Hoisted input projection: x_t @ W_ih for an embedding input is a row
    # lookup of (emb @ W_ih).  Stored bf16: it only feeds pre-activation adds.
    emb_p = jnp.zeros((emb.shape[0], HP), f32).at[:, :H].set(emb)
    gi_table = (jnp.dot(emb_p, pad_gate_w(w_ih)) + b_fold).astype(jnp.bfloat16)

    def pad_cols(w):         # (H, L) -> (HP, LP)
        return jnp.zeros((HP, LP), f32).at[:H, :L].set(w)

    w_proj = jnp.concatenate([pad_cols(w_mu), pad_cols(w_sig)],
                             axis=1).astype(jnp.bfloat16)         # (HP, 2LP)
    b_proj = jnp.concatenate(
        [jnp.zeros((1, LP), f32).at[:, :L].set(b_mu),
         jnp.zeros((1, LP), f32).at[:, :L].set(b_sig)], axis=1)   # (1, 2LP)

    return dict(gi_table=gi_table, w_hh=w_hh_p, b_hn=b_hn,
                w_proj=w_proj, b_proj=b_proj)


def encoder_forward(tokens, prep, eps, *, t_blk=None):
    """tokens: (B, T) int32. Returns (z, mu, log_var) like Encoder.forward."""
    B, T = tokens.shape
    gi_table = prep["gi_table"]
    w_hh_p = prep["w_hh"]
    b_hn = prep["b_hn"]
    w_proj = prep["w_proj"]
    b_proj = prep["b_proj"]

    HP = w_hh_p.shape[0]
    LP = w_proj.shape[1] // 2
    L = eps.shape[1]
    BP = _round_up(B, SUBLANE)
    f32 = jnp.float32

    # Gather gi rows directly into time-major, batch-padded layout (bf16).
    # TODO(synk): for long T, gather gi_table rows inside the kernel via
    # scalar-prefetched tokens instead of materializing gi_seq in HBM.
    tok_p = jnp.zeros((T, BP), tokens.dtype).at[:, :B].set(tokens.T)
    gi_seq = jnp.take(gi_table, tok_p, axis=0)            # (T, BP, 3HP) bf16
    eps_p = jnp.zeros((BP, LP), f32).at[:B, :L].set(eps)

    # Timestep block: largest divisor of T not exceeding 256 (keeps the gi
    # block well inside VMEM for long sequences; one block at small T).
    if t_blk is None:
        t_blk = T if T <= 256 else max(d for d in range(1, 257) if T % d == 0)
    assert T % t_blk == 0, "t_blk must divide T"
    n_blocks = T // t_blk
    full2 = lambda s: (0, 0)

    out = pl.pallas_call(
        encoder_fused_kernel,
        out_shape=jax.ShapeDtypeStruct((BP, 3 * LP), f32),
        grid_spec=pltpu.PrefetchScalarGridSpec(
            num_scalar_prefetch=0,
            grid=(n_blocks,),
            in_specs=[
                pl.BlockSpec((t_blk, BP, 3 * HP), lambda s: (s, 0, 0)),  # gi
                pl.BlockSpec((HP, 3 * HP), full2),                       # W_hh
                pl.BlockSpec((1, HP), full2),                            # b_hn
                pl.BlockSpec((HP, 2 * LP), full2),                       # [Wmu|Wsig]
                pl.BlockSpec((1, 2 * LP), full2),                        # [bmu|bsig]
                pl.BlockSpec((BP, LP), full2),                           # eps
            ],
            out_specs=pl.BlockSpec((BP, 3 * LP), full2),                 # [z|mu|lv]
            scratch_shapes=[pltpu.VMEM((BP, HP), f32)],                  # h state
        ),
        compiler_params=pltpu.CompilerParams(
            dimension_semantics=("arbitrary",),
            vmem_limit_bytes=32 * 1024 * 1024),
    )(gi_seq, w_hh_p, b_hn, w_proj, b_proj, eps_p)

    z = out[:B, :L]
    mu = out[:B, LP:LP + L]
    log_var = out[:B, 2 * LP:2 * LP + L]
    return z, mu, log_var


def init_params(key, input_size, hidden_size, latent_size):
    ks = jax.random.split(key, 9)
    s = 0.1
    emb_table = jax.random.normal(ks[0], (input_size, hidden_size), jnp.float32) * s
    # GRU weights stored pre-transposed for x @ W layout; gate order [r, z, n]
    w_ih = jax.random.normal(ks[1], (hidden_size, 3 * hidden_size), jnp.float32) * s
    w_hh = jax.random.normal(ks[2], (hidden_size, 3 * hidden_size), jnp.float32) * s
    b_ih = jax.random.normal(ks[3], (1, 3 * hidden_size), jnp.float32) * s
    b_hh = jax.random.normal(ks[4], (1, 3 * hidden_size), jnp.float32) * s
    w_mu = jax.random.normal(ks[5], (hidden_size, latent_size), jnp.float32) * s
    b_mu = jax.random.normal(ks[6], (1, latent_size), jnp.float32) * s
    w_sig = jax.random.normal(ks[7], (hidden_size, latent_size), jnp.float32) * s
    b_sig = jax.random.normal(ks[8], (1, latent_size), jnp.float32) * s
    return (emb_table, w_ih, w_hh, b_ih, b_hh, w_mu, b_mu, w_sig, b_sig)


def encoder_reference(tokens, params, eps):
    """Pure-JAX f32 reference matching PyTorch GRU + reparameterization."""
    emb, w_ih, w_hh, b_ih, b_hh, w_mu, b_mu, w_sig, b_sig = params
    B, T = tokens.shape
    H = emb.shape[1]
    x = jnp.take(emb, tokens, axis=0)                     # (B, T, H)
    h = jnp.zeros((B, H), jnp.float32)
    for t in range(T):
        gi = x[:, t] @ w_ih + b_ih
        gh = h @ w_hh + b_hh
        r = jax.nn.sigmoid(gi[:, :H] + gh[:, :H])
        zg = jax.nn.sigmoid(gi[:, H:2 * H] + gh[:, H:2 * H])
        n = jnp.tanh(gi[:, 2 * H:] + r * gh[:, 2 * H:])
        h = (1.0 - zg) * n + zg * h
    mu = h @ w_mu + b_mu
    lv = h @ w_sig + b_sig
    z = mu + eps * jnp.exp(lv * 2.0 ** -1)
    return z, mu, lv


if __name__ == "__main__":
    B, T = 2, 8
    input_size, hidden_size, latent_size = 16, 32, 10

    key = jax.random.PRNGKey(0)
    k_param, k_tok, k_eps = jax.random.split(key, 3)

    params = init_params(k_param, input_size, hidden_size, latent_size)
    tokens = jax.random.randint(k_tok, (B, T), 0, input_size, dtype=jnp.int32)
    # TODO(synk): reparameterization noise (torch.randn in forward) is passed
    # in as a deterministic `eps` input here (could use pltpu.prng_* in-kernel).
    eps = jax.random.normal(k_eps, (B, latent_size), jnp.float32)

    # One-time weight-layout transform (out of the per-call hot path).
    prep = jax.tree_util.tree_map(jax.block_until_ready, prepare_params(params))

    fwd = jax.jit(encoder_forward)
    z, mu, log_var = fwd(tokens, prep, eps)
    jax.block_until_ready((z, mu, log_var))

    assert z.shape == (B, latent_size)
    assert mu.shape == (B, latent_size)
    assert log_var.shape == (B, latent_size)

    # Correctness check vs. f32 reference (bf16 MXU / bf16-gi drift within tol).
    z_r, mu_r, lv_r = encoder_reference(tokens, params, eps)
    assert jnp.allclose(mu, mu_r, atol=2e-2), float(jnp.max(jnp.abs(mu - mu_r)))
    assert jnp.allclose(log_var, lv_r, atol=2e-2), float(jnp.max(jnp.abs(log_var - lv_r)))
    assert jnp.allclose(z, z_r, atol=2e-2), float(jnp.max(jnp.abs(z - z_r)))

    print("KERNEL_OK")
</pallas_src>

<mosaic_0001>
module attributes {stable_mosaic.version = 11 : i64} {
  func.func @encoder_fused_kernel(%arg0: i32, %arg1: memref<8x8x384xbf16, #tpu.memory_space<vmem>>, %arg2: memref<128x384xbf16, #tpu.memory_space<vmem>>, %arg3: memref<1x128xf32, #tpu.memory_space<vmem>>, %arg4: memref<128x256xbf16, #tpu.memory_space<vmem>>, %arg5: memref<1x256xf32, #tpu.memory_space<vmem>>, %arg6: memref<8x128xf32, #tpu.memory_space<vmem>>, %arg7: memref<8x384xf32, #tpu.memory_space<vmem>>, %arg8: memref<8x128xf32, #tpu.memory_space<vmem>>) attributes {dimension_semantics = [#tpu.dimension_semantics<arbitrary>], iteration_bounds = array<i64: 1>, scalar_prefetch = 0 : i64, scratch_operands = 1 : i64, tpu.core_type = #tpu.core_type<tc>, window_params = [{transform_indices = @transform_0, window_bounds = array<i64: 8, 8, 384>}, {pipeline_mode = #tpu.pipeline_mode<synchronous>, transform_indices = @transform_1, window_bounds = array<i64: 128, 384>}, {pipeline_mode = #tpu.pipeline_mode<synchronous>, transform_indices = @transform_2, window_bounds = array<i64: 1, 128>}, {pipeline_mode = #tpu.pipeline_mode<synchronous>, transform_indices = @transform_3, window_bounds = array<i64: 128, 256>}, {pipeline_mode = #tpu.pipeline_mode<synchronous>, transform_indices = @transform_4, window_bounds = array<i64: 1, 256>}, {pipeline_mode = #tpu.pipeline_mode<synchronous>, transform_indices = @transform_5, window_bounds = array<i64: 8, 128>}, {pipeline_mode = #tpu.pipeline_mode<synchronous>, transform_indices = @transform_6, window_bounds = array<i64: 8, 384>}]} {
    %c0_i32 = arith.constant 0 : i32
    %0 = arith.cmpi eq, %arg0, %c0_i32 : i32
    %1 = arith.extui %0 : i1 to i32
    %c0_i32_0 = arith.constant 0 : i32
    %2 = arith.cmpi ne, %1, %c0_i32_0 : i32
    scf.if %2 {
      %cst_86 = arith.constant 0.000000e+00 : f32
      %296 = vector.broadcast %cst_86 : f32 to vector<8x128xf32>
      %c0_87 = arith.constant 0 : index
      %c0_88 = arith.constant 0 : index
      %297 = vector.load %arg8[%c0_87, %c0_88] : memref<8x128xf32, #tpu.memory_space<vmem>>, vector<8x128xf32>
      tpu.vector_store %arg8[%c0_87, %c0_88], %296 {strides = array<i32>} : memref<8x128xf32, #tpu.memory_space<vmem>>, vector<8x128xf32>,
      %cst_89 = arith.constant 0.000000e+00 : f32
      %298 = vector.broadcast %cst_89 : f32 to vector<8x384xf32>
      %c0_90 = arith.constant 0 : index
      %c0_91 = arith.constant 0 : index
      %299 = vector.load %arg7[%c0_90, %c0_91] : memref<8x384xf32, #tpu.memory_space<vmem>>, vector<8x384xf32>
      tpu.vector_store %arg7[%c0_90, %c0_91], %298 {strides = array<i32>} : memref<8x384xf32, #tpu.memory_space<vmem>>, vector<8x384xf32>,
    } else {
    }
    %c0 = arith.constant 0 : index
    %c0_1 = arith.constant 0 : index
    %3 = vector.load %arg2[%c0, %c0_1] : memref<128x384xbf16, #tpu.memory_space<vmem>>, vector<128x384xbf16>
    %c0_2 = arith.constant 0 : index
    %c0_3 = arith.constant 0 : index
    %4 = vector.load %arg3[%c0_2, %c0_3] : memref<1x128xf32, #tpu.memory_space<vmem>>, vector<1x128xf32>
    %c0_i32_4 = arith.constant 0 : i32
    %5 = arith.index_cast %c0_i32_4 : i32 to index
    %c0_5 = arith.constant 0 : index
    %c0_6 = arith.constant 0 : index
    %6 = vector.load %arg1[%5, %c0_5, %c0_6] : memref<8x8x384xbf16, #tpu.memory_space<vmem>>, vector<1x8x384xbf16>
    %7 = vector.shape_cast %6 : vector<1x8x384xbf16> to vector<8x384xbf16>
    %8 = arith.extf %7 : vector<8x384xbf16> to vector<8x384xf32>
    %c0_7 = arith.constant 0 : index
    %c0_8 = arith.constant 0 : index
    %9 = vector.load %arg8[%c0_7, %c0_8] : memref<8x128xf32, #tpu.memory_space<vmem>>, vector<8x128xf32>
    %10 = arith.truncf %9 : vector<8x128xf32> to vector<8x128xbf16>
    %cst = arith.constant dense<0.000000e+00> : vector<8x384xf32>
    %11 = tpu.matmul %10, %3, %cst {dimension_numbers = #tpu.dot_dimension_numbers<[1], [0], [0], [1], [0, 0, 1, 1], [], []>} : vector<8x128xbf16>, vector<128x384xbf16>, vector<8x384xf32> -> vector<8x384xf32>
    %12 = vector.extract_strided_slice %8 {offsets = [0, 0], sizes = [8, 128], strides = [1, 1]} : vector<8x384xf32> to vector<8x128xf32>
    %13 = vector.extract_strided_slice %11 {offsets = [0, 0], sizes = [8, 128], strides = [1, 1]} : vector<8x384xf32> to vector<8x128xf32>
    %14 = arith.addf %12, %13 : vector<8x128xf32>
    %15 = arith.negf %14 : vector<8x128xf32>
    %16 = math.exp %15 : vector<8x128xf32>
    %cst_9 = arith.constant 1.000000e+00 : f32
    %17 = vector.broadcast %cst_9 : f32 to vector<8x128xf32>
    %18 = arith.addf %17, %16 : vector<8x128xf32>
    %19 = arith.divf %17, %18 : vector<8x128xf32>
    %20 = vector.extract_strided_slice %8 {offsets = [0, 128], sizes = [8, 128], strides = [1, 1]} : vector<8x384xf32> to vector<8x128xf32>
    %21 = vector.extract_strided_slice %11 {offsets = [0, 128], sizes = [8, 128], strides = [1, 1]} : vector<8x384xf32> to vector<8x128xf32>
    %22 = arith.addf %20, %21 : vector<8x128xf32>
    %23 = arith.negf %22 : vector<8x128xf32>
    %24 = math.exp %23 : vector<8x128xf32>
    %cst_10 = arith.constant 1.000000e+00 : f32
    %25 = vector.broadcast %cst_10 : f32 to vector<8x128xf32>
    %26 = arith.addf %25, %24 : vector<8x128xf32>
    %27 = arith.divf %25, %26 : vector<8x128xf32>
    %28 = vector.extract_strided_slice %8 {offsets = [0, 256], sizes = [8, 128], strides = [1, 1]} : vector<8x384xf32> to vector<8x128xf32>
    %29 = vector.extract_strided_slice %11 {offsets = [0, 256], sizes = [8, 128], strides = [1, 1]} : vector<8x384xf32> to vector<8x128xf32>
    %30 = vector.broadcast %4 : vector<1x128xf32> to vector<8x128xf32>
    %31 = arith.addf %29, %30 : vector<8x128xf32>
    %32 = arith.mulf %19, %31 : vector<8x128xf32>
    %33 = arith.addf %28, %32 : vector<8x128xf32>
    %34 = math.tanh %33 : vector<8x128xf32>
    %cst_11 = arith.constant 1.000000e+00 : f32
    %35 = vector.broadcast %cst_11 : f32 to vector<8x128xf32>
    %36 = arith.subf %35, %27 : vector<8x128xf32>
    %37 = arith.mulf %36, %34 : vector<8x128xf32>
    %38 = arith.mulf %27, %9 : vector<8x128xf32>
    %39 = arith.addf %37, %38 : vector<8x128xf32>
    %c0_12 = arith.constant 0 : index
    %c0_13 = arith.constant 0 : index
    %40 = vector.load %arg8[%c0_12, %c0_13] : memref<8x128xf32, #tpu.memory_space<vmem>>, vector<8x128xf32>
    tpu.vector_store %arg8[%c0_12, %c0_13], %39 {strides = array<i32>} : memref<8x128xf32, #tpu.memory_space<vmem>>, vector<8x128xf32>,
    %c1_i32 = arith.constant 1 : i32
    %41 = arith.index_cast %c1_i32 : i32 to index
    %c0_14 = arith.constant 0 : index
    %c0_15 = arith.constant 0 : index
    %42 = vector.load %arg1[%41, %c0_14, %c0_15] : memref<8x8x384xbf16, #tpu.memory_space<vmem>>, vector<1x8x384xbf16>
    %43 = vector.shape_cast %42 : vector<1x8x384xbf16> to vector<8x384xbf16>
    %44 = arith.extf %43 : vector<8x384xbf16> to vector<8x384xf32>
    %c0_16 = arith.constant 0 : index
    %c0_17 = arith.constant 0 : index
    %45 = vector.load %arg8[%c0_16, %c0_17] : memref<8x128xf32, #tpu.memory_space<vmem>>, vector<8x128xf32>
    %46 = arith.truncf %45 : vector<8x128xf32> to vector<8x128xbf16>
    %cst_18 = arith.constant dense<0.000000e+00> : vector<8x384xf32>
    %47 = tpu.matmul %46, %3, %cst_18 {dimension_numbers = #tpu.dot_dimension_numbers<[1], [0], [0], [1], [0, 0, 1, 1], [], []>} : vector<8x128xbf16>, vector<128x384xbf16>, vector<8x384xf32> -> vector<8x384xf32>
    %48 = vector.extract_strided_slice %44 {offsets = [0, 0], sizes = [8, 128], strides = [1, 1]} : vector<8x384xf32> to vector<8x128xf32>
    %49 = vector.extract_strided_slice %47 {offsets = [0, 0], sizes = [8, 128], strides = [1, 1]} : vector<8x384xf32> to vector<8x128xf32>
    %50 = arith.addf %48, %49 : vector<8x128xf32>
    %51 = arith.negf %50 : vector<8x128xf32>
    %52 = math.exp %51 : vector<8x128xf32>
    %cst_19 = arith.constant 1.000000e+00 : f32
    %53 = vector.broadcast %cst_19 : f32 to vector<8x128xf32>
    %54 = arith.addf %53, %52 : vector<8x128xf32>
    %55 = arith.divf %53, %54 : vector<8x128xf32>
    %56 = vector.extract_strided_slice %44 {offsets = [0, 128], sizes = [8, 128], strides = [1, 1]} : vector<8x384xf32> to vector<8x128xf32>
    %57 = vector.extract_strided_slice %47 {offsets = [0, 128], sizes = [8, 128], strides = [1, 1]} : vector<8x384xf32> to vector<8x128xf32>
    %58 = arith.addf %56, %57 : vector<8x128xf32>
    %59 = arith.negf %58 : vector<8x128xf32>
    %60 = math.exp %59 : vector<8x128xf32>
    %cst_20 = arith.constant 1.000000e+00 : f32
    %61 = vector.broadcast %cst_20 : f32 to vector<8x128xf32>
    %62 = arith.addf %61, %60 : vector<8x128xf32>
    %63 = arith.divf %61, %62 : vector<8x128xf32>
    %64 = vector.extract_strided_slice %44 {offsets = [0, 256], sizes = [8, 128], strides = [1, 1]} : vector<8x384xf32> to vector<8x128xf32>
    %65 = vector.extract_strided_slice %47 {offsets = [0, 256], sizes = [8, 128], strides = [1, 1]} : vector<8x384xf32> to vector<8x128xf32>
    %66 = vector.broadcast %4 : vector<1x128xf32> to vector<8x128xf32>
    %67 = arith.addf %65, %66 : vector<8x128xf32>
    %68 = arith.mulf %55, %67 : vector<8x128xf32>
    %69 = arith.addf %64, %68 : vector<8x128xf32>
    %70 = math.tanh %69 : vector<8x128xf32>
    %cst_21 = arith.constant 1.000000e+00 : f32
    %71 = vector.broadcast %cst_21 : f32 to vector<8x128xf32>
    %72 = arith.subf %71, %63 : vector<8x128xf32>
    %73 = arith.mulf %72, %70 : vector<8x128xf32>
    %74 = arith.mulf %63, %45 : vector<8x128xf32>
    %75 = arith.addf %73, %74 : vector<8x128xf32>
    %c0_22 = arith.constant 0 : index
    %c0_23 = arith.constant 0 : index
    %76 = vector.load %arg8[%c0_22, %c0_23] : memref<8x128xf32, #tpu.memory_space<vmem>>, vector<8x128xf32>
    tpu.vector_store %arg8[%c0_22, %c0_23], %75 {strides = array<i32>} : memref<8x128xf32, #tpu.memory_space<vmem>>, vector<8x128xf32>,
    %c2_i32 = arith.constant 2 : i32
    %77 = arith.index_cast %c2_i32 : i32 to index
    %c0_24 = arith.constant 0 : index
    %c0_25 = arith.constant 0 : index
    %78 = vector.load %arg1[%77, %c0_24, %c0_25] : memref<8x8x384xbf16, #tpu.memory_space<vmem>>, vector<1x8x384xbf16>
    %79 = vector.shape_cast %78 : vector<1x8x384xbf16> to vector<8x384xbf16>
    %80 = arith.extf %79 : vector<8x384xbf16> to vector<8x384xf32>
    %c0_26 = arith.constant 0 : index
    %c0_27 = arith.constant 0 : index
    %81 = vector.load %arg8[%c0_26, %c0_27] : memref<8x128xf32, #tpu.memory_space<vmem>>, vector<8x128xf32>
    %82 = arith.truncf %81 : vector<8x128xf32> to vector<8x128xbf16>
    %cst_28 = arith.constant dense<0.000000e+00> : vector<8x384xf32>
    %83 = tpu.matmul %82, %3, %cst_28 {dimension_numbers = #tpu.dot_dimension_numbers<[1], [0], [0], [1], [0, 0, 1, 1], [], []>} : vector<8x128xbf16>, vector<128x384xbf16>, vector<8x384xf32> -> vector<8x384xf32>
    %84 = vector.extract_strided_slice %80 {offsets = [0, 0], sizes = [8, 128], strides = [1, 1]} : vector<8x384xf32> to vector<8x128xf32>
    %85 = vector.extract_strided_slice %83 {offsets = [0, 0], sizes = [8, 128], strides = [1, 1]} : vector<8x384xf32> to vector<8x128xf32>
    %86 = arith.addf %84, %85 : vector<8x128xf32>
    %87 = arith.negf %86 : vector<8x128xf32>
    %88 = math.exp %87 : vector<8x128xf32>
    %cst_29 = arith.constant 1.000000e+00 : f32
    %89 = vector.broadcast %cst_29 : f32 to vector<8x128xf32>
    %90 = arith.addf %89, %88 : vector<8x128xf32>
    %91 = arith.divf %89, %90 : vector<8x128xf32>
    %92 = vector.extract_strided_slice %80 {offsets = [0, 128], sizes = [8, 128], strides = [1, 1]} : vector<8x384xf32> to vector<8x128xf32>
    %93 = vector.extract_strided_slice %83 {offsets = [0, 128], sizes = [8, 128], strides = [1, 1]} : vector<8x384xf32> to vector<8x128xf32>
    %94 = arith.addf %92, %93 : vector<8x128xf32>
    %95 = arith.negf %94 : vector<8x128xf32>
    %96 = math.exp %95 : vector<8x128xf32>
    %cst_30 = arith.constant 1.000000e+00 : f32
    %97 = vector.broadcast %cst_30 : f32 to vector<8x128xf32>
    %98 = arith.addf %97, %96 : vector<8x128xf32>
    %99 = arith.divf %97, %98 : vector<8x128xf32>
    %100 = vector.extract_strided_slice %80 {offsets = [0, 256], sizes = [8, 128], strides = [1, 1]} : vector<8x384xf32> to vector<8x128xf32>
    %101 = vector.extract_strided_slice %83 {offsets = [0, 256], sizes = [8, 128], strides = [1, 1]} : vector<8x384xf32> to vector<8x128xf32>
    %102 = vector.broadcast %4 : vector<1x128xf32> to vector<8x128xf32>
    %103 = arith.addf %101, %102 : vector<8x128xf32>
    %104 = arith.mulf %91, %103 : vector<8x128xf32>
    %105 = arith.addf %100, %104 : vector<8x128xf32>
    %106 = math.tanh %105 : vector<8x128xf32>
    %cst_31 = arith.constant 1.000000e+00 : f32
    %107 = vector.broadcast %cst_31 : f32 to vector<8x128xf32>
    %108 = arith.subf %107, %99 : vector<8x128xf32>
    %109 = arith.mulf %108, %106 : vector<8x128xf32>
    %110 = arith.mulf %99, %81 : vector<8x128xf32>
    %111 = arith.addf %109, %110 : vector<8x128xf32>
    %c0_32 = arith.constant 0 : index
    %c0_33 = arith.constant 0 : index
    %112 = vector.load %arg8[%c0_32, %c0_33] : memref<8x128xf32, #tpu.memory_space<vmem>>, vector<8x128xf32>
    tpu.vector_store %arg8[%c0_32, %c0_33], %111 {strides = array<i32>} : memref<8x128xf32, #tpu.memory_space<vmem>>, vector<8x128xf32>,
    %c3_i32 = arith.constant 3 : i32
    %113 = arith.index_cast %c3_i32 : i32 to index
    %c0_34 = arith.constant 0 : index
    %c0_35 = arith.constant 0 : index
    %114 = vector.load %arg1[%113, %c0_34, %c0_35] : memref<8x8x384xbf16, #tpu.memory_space<vmem>>, vector<1x8x384xbf16>
    %115 = vector.shape_cast %114 : vector<1x8x384xbf16> to vector<8x384xbf16>
    %116 = arith.extf %115 : vector<8x384xbf16> to vector<8x384xf32>
    %c0_36 = arith.constant 0 : index
    %c0_37 = arith.constant 0 : index
    %117 = vector.load %arg8[%c0_36, %c0_37] : memref<8x128xf32, #tpu.memory_space<vmem>>, vector<8x128xf32>
    %118 = arith.truncf %117 : vector<8x128xf32> to vector<8x128xbf16>
    %cst_38 = arith.constant dense<0.000000e+00> : vector<8x384xf32>
    %119 = tpu.matmul %118, %3, %cst_38 {dimension_numbers = #tpu.dot_dimension_numbers<[1], [0], [0], [1], [0, 0, 1, 1], [], []>} : vector<8x128xbf16>, vector<128x384xbf16>, vector<8x384xf32> -> vector<8x384xf32>
    %120 = vector.extract_strided_slice %116 {offsets = [0, 0], sizes = [8, 128], strides = [1, 1]} : vector<8x384xf32> to vector<8x128xf32>
    %121 = vector.extract_strided_slice %119 {offsets = [0, 0], sizes = [8, 128], strides = [1, 1]} : vector<8x384xf32> to vector<8x128xf32>
    %122 = arith.addf %120, %121 : vector<8x128xf32>
    %123 = arith.negf %122 : vector<8x128xf32>
    %124 = math.exp %123 : vector<8x128xf32>
    %cst_39 = arith.constant 1.000000e+00 : f32
    %125 = vector.broadcast %cst_39 : f32 to vector<8x128xf32>
    %126 = arith.addf %125, %124 : vector<8x128xf32>
    %127 = arith.divf %125, %126 : vector<8x128xf32>
    %128 = vector.extract_strided_slice %116 {offsets = [0, 128], sizes = [8, 128], strides = [1, 1]} : vector<8x384xf32> to vector<8x128xf32>
    %129 = vector.extract_strided_slice %119 {offsets = [0, 128], sizes = [8, 128], strides = [1, 1]} : vector<8x384xf32> to vector<8x128xf32>
    %130 = arith.addf %128, %129 : vector<8x128xf32>
    %131 = arith.negf %130 : vector<8x128xf32>
    %132 = math.exp %131 : vector<8x128xf32>
    %cst_40 = arith.constant 1.000000e+00 : f32
    %133 = vector.broadcast %cst_40 : f32 to vector<8x128xf32>
    %134 = arith.addf %133, %132 : vector<8x128xf32>
    %135 = arith.divf %133, %134 : vector<8x128xf32>
    %136 = vector.extract_strided_slice %116 {offsets = [0, 256], sizes = [8, 128], strides = [1, 1]} : vector<8x384xf32> to vector<8x128xf32>
    %137 = vector.extract_strided_slice %119 {offsets = [0, 256], sizes = [8, 128], strides = [1, 1]} : vector<8x384xf32> to vector<8x128xf32>
    %138 = vector.broadcast %4 : vector<1x128xf32> to vector<8x128xf32>
    %139 = arith.addf %137, %138 : vector<8x128xf32>
    %140 = arith.mulf %127, %139 : vector<8x128xf32>
    %141 = arith.addf %136, %140 : vector<8x128xf32>
    %142 = math.tanh %141 : vector<8x128xf32>
    %cst_41 = arith.constant 1.000000e+00 : f32
    %143 = vector.broadcast %cst_41 : f32 to vector<8x128xf32>
    %144 = arith.subf %143, %135 : vector<8x128xf32>
    %145 = arith.mulf %144, %142 : vector<8x128xf32>
    %146 = arith.mulf %135, %117 : vector<8x128xf32>
    %147 = arith.addf %145, %146 : vector<8x128xf32>
    %c0_42 = arith.constant 0 : index
    %c0_43 = arith.constant 0 : index
    %148 = vector.load %arg8[%c0_42, %c0_43] : memref<8x128xf32, #tpu.memory_space<vmem>>, vector<8x128xf32>
    tpu.vector_store %arg8[%c0_42, %c0_43], %147 {strides = array<i32>} : memref<8x128xf32, #tpu.memory_space<vmem>>, vector<8x128xf32>,
    %c4_i32 = arith.constant 4 : i32
    %149 = arith.index_cast %c4_i32 : i32 to index
    %c0_44 = arith.constant 0 : index
    %c0_45 = arith.constant 0 : index
    %150 = vector.load %arg1[%149, %c0_44, %c0_45] : memref<8x8x384xbf16, #tpu.memory_space<vmem>>, vector<1x8x384xbf16>
    %151 = vector.shape_cast %150 : vector<1x8x384xbf16> to vector<8x384xbf16>
    %152 = arith.extf %151 : vector<8x384xbf16> to vector<8x384xf32>
    %c0_46 = arith.constant 0 : index
    %c0_47 = arith.constant 0 : index
    %153 = vector.load %arg8[%c0_46, %c0_47] : memref<8x128xf32, #tpu.memory_space<vmem>>, vector<8x128xf32>
    %154 = arith.truncf %153 : vector<8x128xf32> to vector<8x128xbf16>
    %cst_48 = arith.constant dense<0.000000e+00> : vector<8x384xf32>
    %155 = tpu.matmul %154, %3, %cst_48 {dimension_numbers = #tpu.dot_dimension_numbers<[1], [0], [0], [1], [0, 0, 1, 1], [], []>} : vector<8x128xbf16>, vector<128x384xbf16>, vector<8x384xf32> -> vector<8x384xf32>
    %156 = vector.extract_strided_slice %152 {offsets = [0, 0], sizes = [8, 128], strides = [1, 1]} : vector<8x384xf32> to vector<8x128xf32>
    %157 = vector.extract_strided_slice %155 {offsets = [0, 0], sizes = [8, 128], strides = [1, 1]} : vector<8x384xf32> to vector<8x128xf32>
    %158 = arith.addf %156, %157 : vector<8x128xf32>
    %159 = arith.negf %158 : vector<8x128xf32>
    %160 = math.exp %159 : vector<8x128xf32>
    %cst_49 = arith.constant 1.000000e+00 : f32
    %161 = vector.broadcast %cst_49 : f32 to vector<8x128xf32>
    %162 = arith.addf %161, %160 : vector<8x128xf32>
    %163 = arith.divf %161, %162 : vector<8x128xf32>
    %164 = vector.extract_strided_slice %152 {offsets = [0, 128], sizes = [8, 128], strides = [1, 1]} : vector<8x384xf32> to vector<8x128xf32>
    %165 = vector.extract_strided_slice %155 {offsets = [0, 128], sizes = [8, 128], strides = [1, 1]} : vector<8x384xf32> to vector<8x128xf32>
    %166 = arith.addf %164, %165 : vector<8x128xf32>
    %167 = arith.negf %166 : vector<8x128xf32>
    %168 = math.exp %167 : vector<8x128xf32>
    %cst_50 = arith.constant 1.000000e+00 : f32
    %169 = vector.broadcast %cst_50 : f32 to vector<8x128xf32>
    %170 = arith.addf %169, %168 : vector<8x128xf32>
    %171 = arith.divf %169, %170 : vector<8x128xf32>
    %172 = vector.extract_strided_slice %152 {offsets = [0, 256], sizes = [8, 128], strides = [1, 1]} : vector<8x384xf32> to vector<8x128xf32>
    %173 = vector.extract_strided_slice %155 {offsets = [0, 256], sizes = [8, 128], strides = [1, 1]} : vector<8x384xf32> to vector<8x128xf32>
    %174 = vector.broadcast %4 : vector<1x128xf32> to vector<8x128xf32>
    %175 = arith.addf %173, %174 : vector<8x128xf32>
    %176 = arith.mulf %163, %175 : vector<8x128xf32>
    %177 = arith.addf %172, %176 : vector<8x128xf32>
    %178 = math.tanh %177 : vector<8x128xf32>
    %cst_51 = arith.constant 1.000000e+00 : f32
    %179 = vector.broadcast %cst_51 : f32 to vector<8x128xf32>
    %180 = arith.subf %179, %171 : vector<8x128xf32>
    %181 = arith.mulf %180, %178 : vector<8x128xf32>
    %182 = arith.mulf %171, %153 : vector<8x128xf32>
    %183 = arith.addf %181, %182 : vector<8x128xf32>
    %c0_52 = arith.constant 0 : index
    %c0_53 = arith.constant 0 : index
    %184 = vector.load %arg8[%c0_52, %c0_53] : memref<8x128xf32, #tpu.memory_space<vmem>>, vector<8x128xf32>
    tpu.vector_store %arg8[%c0_52, %c0_53], %183 {strides = array<i32>} : memref<8x128xf32, #tpu.memory_space<vmem>>, vector<8x128xf32>,
    %c5_i32 = arith.constant 5 : i32
    %185 = arith.index_cast %c5_i32 : i32 to index
    %c0_54 = arith.constant 0 : index
    %c0_55 = arith.constant 0 : index
    %186 = vector.load %arg1[%185, %c0_54, %c0_55] : memref<8x8x384xbf16, #tpu.memory_space<vmem>>, vector<1x8x384xbf16>
    %187 = vector.shape_cast %186 : vector<1x8x384xbf16> to vector<8x384xbf16>
    %188 = arith.extf %187 : vector<8x384xbf16> to vector<8x384xf32>
    %c0_56 = arith.constant 0 : index
    %c0_57 = arith.constant 0 : index
    %189 = vector.load %arg8[%c0_56, %c0_57] : memref<8x128xf32, #tpu.memory_space<vmem>>, vector<8x128xf32>
    %190 = arith.truncf %189 : vector<8x128xf32> to vector<8x128xbf16>
    %cst_58 = arith.constant dense<0.000000e+00> : vector<8x384xf32>
    %191 = tpu.matmul %190, %3, %cst_58 {dimension_numbers = #tpu.dot_dimension_numbers<[1], [0], [0], [1], [0, 0, 1, 1], [], []>} : vector<8x128xbf16>, vector<128x384xbf16>, vector<8x384xf32> -> vector<8x384xf32>
    %192 = vector.extract_strided_slice %188 {offsets = [0, 0], sizes = [8, 128], strides = [1, 1]} : vector<8x384xf32> to vector<8x128xf32>
    %193 = vector.extract_strided_slice %191 {offsets = [0, 0], sizes = [8, 128], strides = [1, 1]} : vector<8x384xf32> to vector<8x128xf32>
    %194 = arith.addf %192, %193 : vector<8x128xf32>
    %195 = arith.negf %194 : vector<8x128xf32>
    %196 = math.exp %195 : vector<8x128xf32>
    %cst_59 = arith.constant 1.000000e+00 : f32
    %197 = vector.broadcast %cst_59 : f32 to vector<8x128xf32>
    %198 = arith.addf %197, %196 : vector<8x128xf32>
    %199 = arith.divf %197, %198 : vector<8x128xf32>
    %200 = vector.extract_strided_slice %188 {offsets = [0, 128], sizes = [8, 128], strides = [1, 1]} : vector<8x384xf32> to vector<8x128xf32>
    %201 = vector.extract_strided_slice %191 {offsets = [0, 128], sizes = [8, 128], strides = [1, 1]} : vector<8x384xf32> to vector<8x128xf32>
    %202 = arith.addf %200, %201 : vector<8x128xf32>
    %203 = arith.negf %202 : vector<8x128xf32>
    %204 = math.exp %203 : vector<8x128xf32>
    %cst_60 = arith.constant 1.000000e+00 : f32
    %205 = vector.broadcast %cst_60 : f32 to vector<8x128xf32>
    %206 = arith.addf %205, %204 : vector<8x128xf32>
    %207 = arith.divf %205, %206 : vector<8x128xf32>
    %208 = vector.extract_strided_slice %188 {offsets = [0, 256], sizes = [8, 128], strides = [1, 1]} : vector<8x384xf32> to vector<8x128xf32>
    %209 = vector.extract_strided_slice %191 {offsets = [0, 256], sizes = [8, 128], strides = [1, 1]} : vector<8x384xf32> to vector<8x128xf32>
    %210 = vector.broadcast %4 : vector<1x128xf32> to vector<8x128xf32>
    %211 = arith.addf %209, %210 : vector<8x128xf32>
    %212 = arith.mulf %199, %211 : vector<8x128xf32>
    %213 = arith.addf %208, %212 : vector<8x128xf32>
    %214 = math.tanh %213 : vector<8x128xf32>
    %cst_61 = arith.constant 1.000000e+00 : f32
    %215 = vector.broadcast %cst_61 : f32 to vector<8x128xf32>
    %216 = arith.subf %215, %207 : vector<8x128xf32>
    %217 = arith.mulf %216, %214 : vector<8x128xf32>
    %218 = arith.mulf %207, %189 : vector<8x128xf32>
    %219 = arith.addf %217, %218 : vector<8x128xf32>
    %c0_62 = arith.constant 0 : index
    %c0_63 = arith.constant 0 : index
    %220 = vector.load %arg8[%c0_62, %c0_63] : memref<8x128xf32, #tpu.memory_space<vmem>>, vector<8x128xf32>
    tpu.vector_store %arg8[%c0_62, %c0_63], %219 {strides = array<i32>} : memref<8x128xf32, #tpu.memory_space<vmem>>, vector<8x128xf32>,
    %c6_i32 = arith.constant 6 : i32
    %221 = arith.index_cast %c6_i32 : i32 to index
    %c0_64 = arith.constant 0 : index
    %c0_65 = arith.constant 0 : index
    %222 = vector.load %arg1[%221, %c0_64, %c0_65] : memref<8x8x384xbf16, #tpu.memory_space<vmem>>, vector<1x8x384xbf16>
    %223 = vector.shape_cast %222 : vector<1x8x384xbf16> to vector<8x384xbf16>
    %224 = arith.extf %223 : vector<8x384xbf16> to vector<8x384xf32>
    %c0_66 = arith.constant 0 : index
    %c0_67 = arith.constant 0 : index
    %225 = vector.load %arg8[%c0_66, %c0_67] : memref<8x128xf32, #tpu.memory_space<vmem>>, vector<8x128xf32>
    %226 = arith.truncf %225 : vector<8x128xf32> to vector<8x128xbf16>
    %cst_68 = arith.constant dense<0.000000e+00> : vector<8x384xf32>
    %227 = tpu.matmul %226, %3, %cst_68 {dimension_numbers = #tpu.dot_dimension_numbers<[1], [0], [0], [1], [0, 0, 1, 1], [], []>} : vector<8x128xbf16>, vector<128x384xbf16>, vector<8x384xf32> -> vector<8x384xf32>
    %228 = vector.extract_strided_slice %224 {offsets = [0, 0], sizes = [8, 128], strides = [1, 1]} : vector<8x384xf32> to vector<8x128xf32>
    %229 = vector.extract_strided_slice %227 {offsets = [0, 0], sizes = [8, 128], strides = [1, 1]} : vector<8x384xf32> to vector<8x128xf32>
    %230 = arith.addf %228, %229 : vector<8x128xf32>
    %231 = arith.negf %230 : vector<8x128xf32>
    %232 = math.exp %231 : vector<8x128xf32>
    %cst_69 = arith.constant 1.000000e+00 : f32
    %233 = vector.broadcast %cst_69 : f32 to vector<8x128xf32>
    %234 = arith.addf %233, %232 : vector<8x128xf32>
    %235 = arith.divf %233, %234 : vector<8x128xf32>
    %236 = vector.extract_strided_slice %224 {offsets = [0, 128], sizes = [8, 128], strides = [1, 1]} : vector<8x384xf32> to vector<8x128xf32>
    %237 = vector.extract_strided_slice %227 {offsets = [0, 128], sizes = [8, 128], strides = [1, 1]} : vector<8x384xf32> to vector<8x128xf32>
    %238 = arith.addf %236, %237 : vector<8x128xf32>
    %239 = arith.negf %238 : vector<8x128xf32>
    %240 = math.exp %239 : vector<8x128xf32>
    %cst_70 = arith.constant 1.000000e+00 : f32
    %241 = vector.broadcast %cst_70 : f32 to vector<8x128xf32>
    %242 = arith.addf %241, %240 : vector<8x128xf32>
    %243 = arith.divf %241, %242 : vector<8x128xf32>
    %244 = vector.extract_strided_slice %224 {offsets = [0, 256], sizes = [8, 128], strides = [1, 1]} : vector<8x384xf32> to vector<8x128xf32>
    %245 = vector.extract_strided_slice %227 {offsets = [0, 256], sizes = [8, 128], strides = [1, 1]} : vector<8x384xf32> to vector<8x128xf32>
    %246 = vector.broadcast %4 : vector<1x128xf32> to vector<8x128xf32>
    %247 = arith.addf %245, %246 : vector<8x128xf32>
    %248 = arith.mulf %235, %247 : vector<8x128xf32>
    %249 = arith.addf %244, %248 : vector<8x128xf32>
    %250 = math.tanh %249 : vector<8x128xf32>
    %cst_71 = arith.constant 1.000000e+00 : f32
    %251 = vector.broadcast %cst_71 : f32 to vector<8x128xf32>
    %252 = arith.subf %251, %243 : vector<8x128xf32>
    %253 = arith.mulf %252, %250 : vector<8x128xf32>
    %254 = arith.mulf %243, %225 : vector<8x128xf32>
    %255 = arith.addf %253, %254 : vector<8x128xf32>
    %c0_72 = arith.constant 0 : index
    %c0_73 = arith.constant 0 : index
    %256 = vector.load %arg8[%c0_72, %c0_73] : memref<8x128xf32, #tpu.memory_space<vmem>>, vector<8x128xf32>
    tpu.vector_store %arg8[%c0_72, %c0_73], %255 {strides = array<i32>} : memref<8x128xf32, #tpu.memory_space<vmem>>, vector<8x128xf32>,
    %c7_i32 = arith.constant 7 : i32
    %257 = arith.index_cast %c7_i32 : i32 to index
    %c0_74 = arith.constant 0 : index
    %c0_75 = arith.constant 0 : index
    %258 = vector.load %arg1[%257, %c0_74, %c0_75] : memref<8x8x384xbf16, #tpu.memory_space<vmem>>, vector<1x8x384xbf16>
    %259 = vector.shape_cast %258 : vector<1x8x384xbf16> to vector<8x384xbf16>
    %260 = arith.extf %259 : vector<8x384xbf16> to vector<8x384xf32>
    %c0_76 = arith.constant 0 : index
    %c0_77 = arith.constant 0 : index
    %261 = vector.load %arg8[%c0_76, %c0_77] : memref<8x128xf32, #tpu.memory_space<vmem>>, vector<8x128xf32>
    %262 = arith.truncf %261 : vector<8x128xf32> to vector<8x128xbf16>
    %cst_78 = arith.constant dense<0.000000e+00> : vector<8x384xf32>
    %263 = tpu.matmul %262, %3, %cst_78 {dimension_numbers = #tpu.dot_dimension_numbers<[1], [0], [0], [1], [0, 0, 1, 1], [], []>} : vector<8x128xbf16>, vector<128x384xbf16>, vector<8x384xf32> -> vector<8x384xf32>
    %264 = vector.extract_strided_slice %260 {offsets = [0, 0], sizes = [8, 128], strides = [1, 1]} : vector<8x384xf32> to vector<8x128xf32>
    %265 = vector.extract_strided_slice %263 {offsets = [0, 0], sizes = [8, 128], strides = [1, 1]} : vector<8x384xf32> to vector<8x128xf32>
    %266 = arith.addf %264, %265 : vector<8x128xf32>
    %267 = arith.negf %266 : vector<8x128xf32>
    %268 = math.exp %267 : vector<8x128xf32>
    %cst_79 = arith.constant 1.000000e+00 : f32
    %269 = vector.broadcast %cst_79 : f32 to vector<8x128xf32>
    %270 = arith.addf %269, %268 : vector<8x128xf32>
    %271 = arith.divf %269, %270 : vector<8x128xf32>
    %272 = vector.extract_strided_slice %260 {offsets = [0, 128], sizes = [8, 128], strides = [1, 1]} : vector<8x384xf32> to vector<8x128xf32>
    %273 = vector.extract_strided_slice %263 {offsets = [0, 128], sizes = [8, 128], strides = [1, 1]} : vector<8x384xf32> to vector<8x128xf32>
    %274 = arith.addf %272, %273 : vector<8x128xf32>
    %275 = arith.negf %274 : vector<8x128xf32>
    %276 = math.exp %275 : vector<8x128xf32>
    %cst_80 = arith.constant 1.000000e+00 : f32
    %277 = vector.broadcast %cst_80 : f32 to vector<8x128xf32>
    %278 = arith.addf %277, %276 : vector<8x128xf32>
    %279 = arith.divf %277, %278 : vector<8x128xf32>
    %280 = vector.extract_strided_slice %260 {offsets = [0, 256], sizes = [8, 128], strides = [1, 1]} : vector<8x384xf32> to vector<8x128xf32>
    %281 = vector.extract_strided_slice %263 {offsets = [0, 256], sizes = [8, 128], strides = [1, 1]} : vector<8x384xf32> to vector<8x128xf32>
    %282 = vector.broadcast %4 : vector<1x128xf32> to vector<8x128xf32>
    %283 = arith.addf %281, %282 : vector<8x128xf32>
    %284 = arith.mulf %271, %283 : vector<8x128xf32>
    %285 = arith.addf %280, %284 : vector<8x128xf32>
    %286 = math.tanh %285 : vector<8x128xf32>
    %cst_81 = arith.constant 1.000000e+00 : f32
    %287 = vector.broadcast %cst_81 : f32 to vector<8x128xf32>
    %288 = arith.subf %287, %279 : vector<8x128xf32>
    %289 = arith.mulf %288, %286 : vector<8x128xf32>
    %290 = arith.mulf %279, %261 : vector<8x128xf32>
    %291 = arith.addf %289, %290 : vector<8x128xf32>
    %c0_82 = arith.constant 0 : index
    %c0_83 = arith.constant 0 : index
    %292 = vector.load %arg8[%c0_82, %c0_83] : memref<8x128xf32, #tpu.memory_space<vmem>>, vector<8x128xf32>
    tpu.vector_store %arg8[%c0_82, %c0_83], %291 {strides = array<i32>} : memref<8x128xf32, #tpu.memory_space<vmem>>, vector<8x128xf32>,
    %c8_i32 = arith.constant 8 : i32
    %c0_i32_84 = arith.constant 0 : i32
    %293 = arith.cmpi eq, %arg0, %c0_i32_84 : i32
    %294 = arith.extui %293 : i1 to i32
    %c0_i32_85 = arith.constant 0 : i32
    %295 = arith.cmpi ne, %294, %c0_i32_85 : i32
    scf.if %295 {
      %c0_86 = arith.constant 0 : index
      %c0_87 = arith.constant 0 : index
      %296 = vector.load %arg8[%c0_86, %c0_87] : memref<8x128xf32, #tpu.memory_space<vmem>>, vector<8x128xf32>
      %297 = arith.truncf %296 : vector<8x128xf32> to vector<8x128xbf16>
      %c0_88 = arith.constant 0 : index
      %c0_89 = arith.constant 0 : index
      %298 = vector.load %arg4[%c0_88, %c0_89] : memref<128x256xbf16, #tpu.memory_space<vmem>>, vector<128x256xbf16>
      %cst_90 = arith.constant dense<0.000000e+00> : vector<8x256xf32>
      %299 = tpu.matmul %297, %298, %cst_90 {dimension_numbers = #tpu.dot_dimension_numbers<[1], [0], [0], [1], [0, 0, 1, 1], [], []>} : vector<8x128xbf16>, vector<128x256xbf16>, vector<8x256xf32> -> vector<8x256xf32>
      %c0_91 = arith.constant 0 : index
      %c0_92 = arith.constant 0 : index
      %300 = vector.load %arg5[%c0_91, %c0_92] : memref<1x256xf32, #tpu.memory_space<vmem>>, vector<1x256xf32>
      %301 = vector.broadcast %300 : vector<1x256xf32> to vector<8x256xf32>
      %302 = arith.addf %299, %301 : vector<8x256xf32>
      %303 = vector.extract_strided_slice %302 {offsets = [0, 0], sizes = [8, 128], strides = [1, 1]} : vector<8x256xf32> to vector<8x128xf32>
      %304 = vector.extract_strided_slice %302 {offsets = [0, 128], sizes = [8, 128], strides = [1, 1]} : vector<8x256xf32> to vector<8x128xf32>
      %c0_93 = arith.constant 0 : index
      %c0_94 = arith.constant 0 : index
      %305 = vector.load %arg6[%c0_93, %c0_94] : memref<8x128xf32, #tpu.memory_space<vmem>>, vector<8x128xf32>
      %cst_95 = arith.constant 5.000000e-01 : f32
      %306 = vector.broadcast %cst_95 : f32 to vector<8x128xf32>
      %307 = arith.mulf %304, %306 : vector<8x128xf32>
      %308 = math.exp %307 : vector<8x128xf32>
      %309 = arith.mulf %305, %308 : vector<8x128xf32>
      %310 = arith.addf %303, %309 : vector<8x128xf32>
      %c0_96 = arith.constant 0 : index
      %c0_97 = arith.constant 0 : index
      %311 = vector.load %arg7[%c0_96, %c0_97] : memref<8x384xf32, #tpu.memory_space<vmem>>, vector<8x128xf32>
      tpu.vector_store %arg7[%c0_96, %c0_97], %310 {strides = array<i32>} : memref<8x384xf32, #tpu.memory_space<vmem>>, vector<8x128xf32>,
      %c0_98 = arith.constant 0 : index
      %c128 = arith.constant 128 : index
      %312 = vector.load %arg7[%c0_98, %c128] : memref<8x384xf32, #tpu.memory_space<vmem>>, vector<8x128xf32>
      tpu.vector_store %arg7[%c0_98, %c128], %303 {strides = array<i32>} : memref<8x384xf32, #tpu.memory_space<vmem>>, vector<8x128xf32>,
      %c0_99 = arith.constant 0 : index
      %c256 = arith.constant 256 : index
      %313 = vector.load %arg7[%c0_99, %c256] : memref<8x384xf32, #tpu.memory_space<vmem>>, vector<8x128xf32>
      tpu.vector_store %arg7[%c0_99, %c256], %304 {strides = array<i32>} : memref<8x384xf32, #tpu.memory_space<vmem>>, vector<8x128xf32>,
    } else {
    }
    return
  }
  func.func @transform_0(%arg0: i32) -> (i32, i32, i32) {
    %c0_i32 = arith.constant 0 : i32
    %c0_i32_0 = arith.constant 0 : i32
    %c0_i32_1 = arith.constant 0 : i32
    return %arg0, %c0_i32, %c0_i32_0 : i32, i32, i32
  }
  func.func @transform_1(%arg0: i32) -> (i32, i32) {
    %c0_i32 = arith.constant 0 : i32
    %c0_i32_0 = arith.constant 0 : i32
    %c0_i32_1 = arith.constant 0 : i32
    return %c0_i32, %c0_i32_0 : i32, i32
  }
  func.func @transform_2(%arg0: i32) -> (i32, i32) {
    %c0_i32 = arith.constant 0 : i32
    %c0_i32_0 = arith.constant 0 : i32
    %c0_i32_1 = arith.constant 0 : i32
    return %c0_i32, %c0_i32_0 : i32, i32
  }
  func.func @transform_3(%arg0: i32) -> (i32, i32) {
    %c0_i32 = arith.constant 0 : i32
    %c0_i32_0 = arith.constant 0 : i32
    %c0_i32_1 = arith.constant 0 : i32
    return %c0_i32, %c0_i32_0 : i32, i32
  }
  func.func @transform_4(%arg0: i32) -> (i32, i32) {
    %c0_i32 = arith.constant 0 : i32
    %c0_i32_0 = arith.constant 0 : i32
    %c0_i32_1 = arith.constant 0 : i32
    return %c0_i32, %c0_i32_0 : i32, i32
  }
  func.func @transform_5(%arg0: i32) -> (i32, i32) {
    %c0_i32 = arith.constant 0 : i32
    %c0_i32_0 = arith.constant 0 : i32
    %c0_i32_1 = arith.constant 0 : i32
    return %c0_i32, %c0_i32_0 : i32, i32
  }
  func.func @transform_6(%arg0: i32) -> (i32, i32) {
    %c0_i32 = arith.constant 0 : i32
    %c0_i32_0 = arith.constant 0 : i32
    %c0_i32_1 = arith.constant 0 : i32
    return %c0_i32, %c0_i32_0 : i32, i32
  }
}

</mosaic_0001>

<llo_original>
// kernel: encoder_forward.1
$region0: #{encoder_forward.1}
  #allocation0 [shape = 'u32[]', space=smem, size = 0x4, offset = 0x4, fixed_abs, tag = 'smem constant byte address 0x4 - core index']
  #allocation1 [shape = 'u32[144,128]{1,0:T(1,128)}', space=vmem, size = 0x12000, scoped, tag = 'internal scratch']
  #allocation2 [shape = 'f32[8,128]{1,0:T(8,128)}', space=vmem, size = 0x1000, scoped, tag = 'scratch operand']
  %s0 = inlined_call_operand.vmem [shape: bf16[8,8,384], index: 0, kind: input, shape index: {}]
  %s1 = inlined_call_operand.vmem [shape: bf16[128,384], index: 1, kind: input, shape index: {}]
  %s2 = inlined_call_operand.vmem [shape: f32[1,128], index: 2, kind: input, shape index: {}]
  %s3 = inlined_call_operand.vmem [shape: bf16[128,256], index: 3, kind: input, shape index: {}]
  %s4 = inlined_call_operand.vmem [shape: f32[1,256], index: 4, kind: input, shape index: {}]
  %s5 = inlined_call_operand.vmem [shape: f32[8,128], index: 5, kind: input, shape index: {}]
  %s6 = inlined_call_operand.vmem [shape: f32[8,384], index: 6, kind: output, shape index: {}]
  %s7 = sld [smem:[#allocation0]]
  $region42: #{encoder_forward.1} parent=0
    _
  %s9 = ssub.s32 1, %s7
  %s10 = scalar_select 0, %s9, %s7
  // Predicated region
  $region2: #{encoder_forward.1} parent=0 // pred_check
    _
  $region3: #{encoder_forward.1} parent=0 // pred_check_branch
    %12 = sbr.rel (0) target = $region5
  $region4: #{encoder_forward.1} parent=0 // pred_region
    _
  $region5: #{encoder_forward.1} parent=0 // pred_fallthru
    _
  // Predicated region
  $region6: #{encoder_forward.1} parent=0 // pred_check
    _
  $region7: #{encoder_forward.1} parent=0 // pred_check_branch
    %14 = sbr.rel (0) target = $region9
  $region8: #{encoder_forward.1} parent=0 // pred_region
    _
  $region9: #{encoder_forward.1} parent=0 // pred_fallthru
    _
  // Predicated region
  $region10: #{encoder_forward.1} parent=0 // pred_check
    _
  $region11: #{encoder_forward.1} parent=0 // pred_check_branch
    %16 = sbr.rel (0) target = $region13
  $region12: #{encoder_forward.1} parent=0 // pred_region
    _
  $region13: #{encoder_forward.1} parent=0 // pred_fallthru
    _
  // Predicated region
  $region14: #{encoder_forward.1} parent=0 // pred_check
    _
  $region15: #{encoder_forward.1} parent=0 // pred_check_branch
    %18 = sbr.rel (0) target = $region17
  $region16: #{encoder_forward.1} parent=0 // pred_region
    _
  $region17: #{encoder_forward.1} parent=0 // pred_fallthru
    _
  // Predicated region
  $region18: #{encoder_forward.1} parent=0 // pred_check
    _
  $region19: #{encoder_forward.1} parent=0 // pred_check_branch
    %20 = sbr.rel (0) target = $region21
  $region20: #{encoder_forward.1} parent=0 // pred_region
    _
  $region21: #{encoder_forward.1} parent=0 // pred_fallthru
    _
  // Predicated region
  $region22: #{encoder_forward.1} parent=0 // pred_check
    _
  $region23: #{encoder_forward.1} parent=0 // pred_check_branch
    %22 = sbr.rel (0) target = $region25
  $region24: #{encoder_forward.1} parent=0 // pred_region
    _
  $region25: #{encoder_forward.1} parent=0 // pred_fallthru
    _
  %p24 = scmp.eq.s32.totalorder 0, 0
  // Predicated region
  $region26: #{encoder_forward.1} parent=0 // pred_check
    %p25 = pneg %p24
  $region27: #{encoder_forward.1} parent=0 // pred_check_branch
    %27 = sbr.rel (%p25) target = $region29
  $region28: #{encoder_forward.1} parent=0 // pred_region
    %28 = vst [vmem:[#allocation2] sm:$0xff] 0.0
    %29 = vst [vmem:[%s6] sm:$0xff] 0.0
    %30 = vst [vmem:[%s6 + $0x8] sm:$0xff] 0.0
    %31 = vst [vmem:[%s6 + $0x10] sm:$0xff] 0.0
  $region29: #{encoder_forward.1} parent=0 // pred_fallthru
    _
  %v32 = vld [vmem:[%s1] sm:$0xff]
  %v33 = vld [vmem:[%s1 + $0x8] sm:$0xf]
  %v34 = vld [vmem:[%s1 + $0xc] sm:$0xff]
  %v35 = vld [vmem:[%s1 + $0x14] sm:$0xf]
  %v36 = vld [vmem:[%s1 + $0x18] sm:$0xff]
  %v37 = vld [vmem:[%s1 + $0x20] sm:$0xf]
  %v38 = vld [vmem:[%s1 + $0x24] sm:$0xff]
  %v39 = vld [vmem:[%s1 + $0x2c] sm:$0xf]
  %v40 = vld [vmem:[%s1 + $0x30] sm:$0xff]
  %v41 = vld [vmem:[%s1 + $0x38] sm:$0xf]
  %v42 = vld [vmem:[%s1 + $0x3c] sm:$0xff]
  %v43 = vld [vmem:[%s1 + $0x44] sm:$0xf]
  %v44 = vld [vmem:[%s1 + $0x48] sm:$0xff]
  %v45 = vld [vmem:[%s1 + $0x50] sm:$0xf]
  %v46 = vld [vmem:[%s1 + $0x54] sm:$0xff]
  %v47 = vld [vmem:[%s1 + $0x5c] sm:$0xf]
  %v48 = vld [vmem:[%s1 + $0x60] sm:$0xff]
  %v49 = vld [vmem:[%s1 + $0x68] sm:$0xf]
  %v50 = vld [vmem:[%s1 + $0x6c] sm:$0xff]
  %v51 = vld [vmem:[%s1 + $0x74] sm:$0xf]
  %v52 = vld [vmem:[%s1 + $0x78] sm:$0xff]
  %v53 = vld [vmem:[%s1 + $0x80] sm:$0xf]
  %v54 = vld [vmem:[%s1 + $0x84] sm:$0xff]
  %v55 = vld [vmem:[%s1 + $0x8c] sm:$0xf]
  %v56 = vld [vmem:[%s1 + $0x90] sm:$0xff]
  %v57 = vld [vmem:[%s1 + $0x98] sm:$0xf]
  %v58 = vld [vmem:[%s1 + $0x9c] sm:$0xff]
  %v59 = vld [vmem:[%s1 + $0xa4] sm:$0xf]
  %v60 = vld [vmem:[%s1 + $0xa8] sm:$0xff]
  %v61 = vld [vmem:[%s1 + $0xb0] sm:$0xf]
  %v62 = vld [vmem:[%s1 + $0xb4] sm:$0xff]
  %v63 = vld [vmem:[%s1 + $0xbc] sm:$0xf]
  %v64 = vld [vmem:[%s2] sm:$0x1]
  %v65 = vld [vmem:[%s0] sm:$0xff]
  %v66 = vld [vmem:[%s0 + $0x8] sm:$0xf]
  %v67 = vunpack.c.l.bf16 %v65
  %v68 = vunpack.c.h.bf16 %v65
  %v69 = vunpack.c.l.bf16 %v66
  %v70 = vld [vmem:[#allocation2] sm:$0xff]
  %v71 = vpack.c.bf16 %v70, %v70
  %v104 = vunpack.c.l.b16 %v32
  %v105 = vunpack.c.h.b16 %v32
  %v106 = vunpack.c.l.b16 %v33
  %v107 = vunpack.c.l.b16 %v34
  %v108 = vunpack.c.h.b16 %v34
  %v109 = vunpack.c.l.b16 %v35
  %v110 = vunpack.c.l.b16 %v36
  %v111 = vunpack.c.h.b16 %v36
  %v112 = vunpack.c.l.b16 %v37
  %v113 = vunpack.c.l.b16 %v38
  %v114 = vunpack.c.h.b16 %v38
  %v115 = vunpack.c.l.b16 %v39
  %v116 = vunpack.c.l.b16 %v40
  %v117 = vunpack.c.h.b16 %v40
  %v118 = vunpack.c.l.b16 %v41
  %v119 = vunpack.c.l.b16 %v42
  %v120 = vunpack.c.h.b16 %v42
  %v121 = vunpack.c.l.b16 %v43
  %v122 = vunpack.c.l.b16 %v44
  %v123 = vunpack.c.h.b16 %v44
  %v124 = vunpack.c.l.b16 %v45
  %v125 = vunpack.c.l.b16 %v46
  %v126 = vunpack.c.h.b16 %v46
  %v127 = vunpack.c.l.b16 %v47
  %v128 = vunpack.c.l.b16 %v48
  %v129 = vunpack.c.h.b16 %v48
  %v130 = vunpack.c.l.b16 %v49
  %v131 = vunpack.c.l.b16 %v50
  %v132 = vunpack.c.h.b16 %v50
  %v133 = vunpack.c.l.b16 %v51
  %v134 = vunpack.c.l.b16 %v52
  %v135 = vunpack.c.h.b16 %v52
  %v136 = vunpack.c.l.b16 %v53
  %v137 = vunpack.c.l.b16 %v54
  %v138 = vunpack.c.h.b16 %v54
  %v139 = vunpack.c.l.b16 %v55
  %v140 = vunpack.c.l.b16 %v56
  %v141 = vunpack.c.h.b16 %v56
  %v142 = vunpack.c.l.b16 %v57
  %v143 = vunpack.c.l.b16 %v58
  %v144 = vunpack.c.h.b16 %v58
  %v145 = vunpack.c.l.b16 %v59
  %v146 = vunpack.c.l.b16 %v60
  %v147 = vunpack.c.h.b16 %v60
  %v148 = vunpack.c.l.b16 %v61
  %v149 = vunpack.c.l.b16 %v62
  %v150 = vunpack.c.h.b16 %v62
  %v151 = vunpack.c.l.b16 %v63
  %v152 = vpack.c.b16 %v107, %v104
  %v153 = vpack.c.b16 %v108, %v105
  %v154 = vpack.c.b16 %v109, %v106
  %v155 = vpack.c.b16 %v113, %v110
  %v156 = vpack.c.b16 %v114, %v111
  %v157 = vpack.c.b16 %v115, %v112
  %v158 = vpack.c.b16 %v119, %v116
  %v159 = vpack.c.b16 %v120, %v117
  %v160 = vpack.c.b16 %v121, %v118
  %v161 = vpack.c.b16 %v125, %v122
  %v162 = vpack.c.b16 %v126, %v123
  %v163 = vpack.c.b16 %v127, %v124
  %v164 = vpack.c.b16 %v131, %v128
  %v165 = vpack.c.b16 %v132, %v129
  %v166 = vpack.c.b16 %v133, %v130
  %v167 = vpack.c.b16 %v137, %v134
  %v168 = vpack.c.b16 %v138, %v135
  %v169 = vpack.c.b16 %v139, %v136
  %v170 = vpack.c.b16 %v143, %v140
  %v171 = vpack.c.b16 %v144, %v141
  %v172 = vpack.c.b16 %v145, %v142
  %v173 = vpack.c.b16 %v149, %v146
  %v174 = vpack.c.b16 %v150, %v147
  %v175 = vpack.c.b16 %v151, %v148
  %200 = vmatprep.subr.bf16.mxu0 %v174
  %201 = vmatpush1.bf16.msra.mxu0 %v173
  %202 = vmatprep.subr.bf16.mxu0 %v171
  %203 = vmatpush1.bf16.msra.mxu0 %v170
  %204 = vmatprep.subr.bf16.mxu0 %v168
  %205 = vmatpush1.bf16.msra.mxu0 %v167
  %206 = vmatprep.subr.bf16.mxu0 %v165
  %207 = vmatpush1.bf16.msra.mxu0 %v164
  %208 = vmatprep.subr.bf16.mxu0 %v162
  %209 = vmatpush1.bf16.msra.mxu0 %v161
  %210 = vmatprep.subr.bf16.mxu0 %v159
  %211 = vmatpush1.bf16.msra.mxu0 %v158
  %212 = vmatprep.subr.bf16.mxu0 %v156
  %213 = vmatpush1.bf16.msra.mxu0 %v155
  %214 = vmatprep.subr.bf16.mxu0 %v153
  %215 = vmatpush1.bf16.msra.mxu0 %v152
  %216 = vmatprep.subr.bf16.mxu0 0
  %217 = vmatpush2.bf16.msra.mxu0 0
  %218 = vmatprep.subr.bf16.mxu0 0
  %219 = vmatpush2.bf16.msra.mxu0 0
  %220 = vmatprep.subr.bf16.mxu0 0
  %221 = vmatpush2.bf16.msra.mxu0 0
  %222 = vmatprep.subr.bf16.mxu0 0
  %223 = vmatpush2.bf16.msra.mxu0 0
  %224 = vmatprep.subr.bf16.mxu0 0
  %225 = vmatpush2.bf16.msra.mxu0 0
  %226 = vmatprep.subr.bf16.mxu0 0
  %227 = vmatpush2.bf16.msra.mxu0 0
  %228 = vmatprep.subr.bf16.mxu0 0
  %229 = vmatpush2.bf16.msra.mxu0 0
  %230 = vmatprep.subr.bf16.mxu0 0
  %231 = vmatpush2.bf16.msra.mxu0 0
  %232 = vmatprep.mubr.bf16.mxu0 0
  %233 = vmatmul.mubr.bf16.gmra.mxu0 %v71
  %v234 = vpop.f32.mrf.mxu0
  %v235 = vadd.f32 0.0, %v234
  %v236 = vpop.f32.mrf.mxu0
  %v237 = vadd.f32 0.0, %v236
  %v238 = vpop.f32.mrf.mxu0
  %v239 = vpop.f32.mrf.mxu0
  %240 = vdwg.mxu0
  %241 = vmatprep.subr.bf16.mxu0 0
  %242 = vmatpush1.bf16.msra.mxu0 %v175
  %243 = vmatprep.subr.bf16.mxu0 0
  %244 = vmatpush1.bf16.msra.mxu0 %v172
  %245 = vmatprep.subr.bf16.mxu0 0
  %246 = vmatpush1.bf16.msra.mxu0 %v169
  %247 = vmatprep.subr.bf16.mxu0 0
  %248 = vmatpush1.bf16.msra.mxu0 %v166
  %249 = vmatprep.subr.bf16.mxu0 0
  %250 = vmatpush1.bf16.msra.mxu0 %v163
  %251 = vmatprep.subr.bf16.mxu0 0
  %252 = vmatpush1.bf16.msra.mxu0 %v160
  %253 = vmatprep.subr.bf16.mxu0 0
  %254 = vmatpush1.bf16.msra.mxu0 %v157
  %255 = vmatprep.subr.bf16.mxu0 0
  %256 = vmatpush1.bf16.msra.mxu0 %v154
  %257 = vmatprep.subr.bf16.mxu0 0
  %258 = vmatpush2.bf16.msra.mxu0 0
  %259 = vmatprep.subr.bf16.mxu0 0
  %260 = vmatpush2.bf16.msra.mxu0 0
  %261 = vmatprep.subr.bf16.mxu0 0
  %262 = vmatpush2.bf16.msra.mxu0 0
  %263 = vmatprep.subr.bf16.mxu0 0
  %264 = vmatpush2.bf16.msra.mxu0 0
  %265 = vmatprep.subr.bf16.mxu0 0
  %266 = vmatpush2.bf16.msra.mxu0 0
  %267 = vmatprep.subr.bf16.mxu0 0
  %268 = vmatpush2.bf16.msra.mxu0 0
  %269 = vmatprep.subr.bf16.mxu0 0
  %270 = vmatpush2.bf16.msra.mxu0 0
  %271 = vmatprep.subr.bf16.mxu0 0
  %272 = vmatpush2.bf16.msra.mxu0 0
  %273 = vmatprep.mubr.bf16.mxu0 0
  %274 = vmatmul.mubr.bf16.gmra.mxu0 %v71
  %v275 = vpop.f32.mrf.mxu0
  %v276 = vadd.f32 0.0, %v275
  %v277 = vpop.f32.mrf.mxu0
  %v278 = vpop.f32.mrf.mxu0
  %v279 = vpop.f32.mrf.mxu0
  %280 = vdwg.mxu0
  %v281 = vadd.f32 %v67, %v235
  %v282 = vxor.u32 %v281, 2147483648
  %v283 = vmul.f32 %v282, 1.442695
  %v284 = vpow.pop %v283
  %v285 = vadd.f32 %v284, 1.0
  %v286 = vrcp.pop %v285
  %v287 = vmul.f32 1.0, %v286
  %v288 = vadd.f32 %v68, %v237
  %v289 = vxor.u32 %v288, 2147483648
  %v290 = vmul.f32 %v289, 1.442695
  %v291 = vpow.pop %v290
  %v292 = vadd.f32 %v291, 1.0
  %v293 = vrcp.pop %v292
  %v294 = vmul.f32 1.0, %v293
  %v296 = vlaneseq
  %v297 = vshrl.u32 %v296, 7
  %v298 = vsub.s32 0, %v297
  %v299 = vrot.slane %v64, %v298
  %v301 = vadd.f32 %v276, %v299
  %v302 = vmul.f32 %v287, %v301
  %v303 = vadd.f32 %v69, %v302
  %v304 = vtanh.pop %v303
  %v305 = vsub.f32 1.0, %v294
  %v306 = vmul.f32 %v305, %v304
  %v307 = vmul.f32 %v294, %v70
  %v308 = vadd.f32 %v306, %v307
  %309 = vst [vmem:[#allocation2] sm:$0xff] %v308
  %s310 = scalar_lea.vmem %s0, 12
  %v311 = vld [vmem:[%s310] sm:$0xff]
  %v312 = vld [vmem:[%s310 + $0x8] sm:$0xf]
  %v313 = vunpack.c.l.bf16 %v311
  %v314 = vunpack.c.h.bf16 %v311
  %v315 = vunpack.c.l.bf16 %v312
  %v316 = vld [vmem:[#allocation2] sm:$0xff]
  %v317 = vpack.c.bf16 %v316, %v316
  %318 = vmatprep.subr.bf16.mxu0 %v174
  %319 = vmatpush1.bf16.msra.mxu0 %v173
  %320 = vmatprep.subr.bf16.mxu0 %v171
  %321 = vmatpush1.bf16.msra.mxu0 %v170
  %322 = vmatprep.subr.bf16.mxu0 %v168
  %323 = vmatpush1.bf16.msra.mxu0 %v167
  %324 = vmatprep.subr.bf16.mxu0 %v165
  %325 = vmatpush1.bf16.msra.mxu0 %v164
  %326 = vmatprep.subr.bf16.mxu0 %v162
  %327 = vmatpush1.bf16.msra.mxu0 %v161
  %328 = vmatprep.subr.bf16.mxu0 %v159
  %329 = vmatpush1.bf16.msra.mxu0 %v158
  %330 = vmatprep.subr.bf16.mxu0 %v156
  %331 = vmatpush1.bf16.msra.mxu0 %v155
  %332 = vmatprep.subr.bf16.mxu0 %v153
  %333 = vmatpush1.bf16.msra.mxu0 %v152
  %334 = vmatprep.subr.bf16.mxu0 0
  %335 = vmatpush2.bf16.msra.mxu0 0
  %336 = vmatprep.subr.bf16.mxu0 0
  %337 = vmatpush2.bf16.msra.mxu0 0
  %338 = vmatprep.subr.bf16.mxu0 0
  %339 = vmatpush2.bf16.msra.mxu0 0
  %340 = vmatprep.subr.bf16.mxu0 0
  %341 = vmatpush2.bf16.msra.mxu0 0
  %342 = vmatprep.subr.bf16.mxu0 0
  %343 = vmatpush2.bf16.msra.mxu0 0
  %344 = vmatprep.subr.bf16.mxu0 0
  %345 = vmatpush2.bf16.msra.mxu0 0
  %346 = vmatprep.subr.bf16.mxu0 0
  %347 = vmatpush2.bf16.msra.mxu0 0
  %348 = vmatprep.subr.bf16.mxu0 0
  %349 = vmatpush2.bf16.msra.mxu0 0
  %350 = vmatprep.mubr.bf16.mxu0 0
  %351 = vmatmul.mubr.bf16.gmra.mxu0 %v317
  %v352 = vpop.f32.mrf.mxu0
  %v353 = vadd.f32 0.0, %v352
  %v354 = vpop.f32.mrf.mxu0
  %v355 = vadd.f32 0.0, %v354
  %v356 = vpop.f32.mrf.mxu0
  %v357 = vpop.f32.mrf.mxu0
  %358 = vdwg.mxu0
  %359 = vmatprep.subr.bf16.mxu0 0
  %360 = vmatpush1.bf16.msra.mxu0 %v175
  %361 = vmatprep.subr.bf16.mxu0 0
  %362 = vmatpush1.bf16.msra.mxu0 %v172
  %363 = vmatprep.subr.bf16.mxu0 0
  %364 = vmatpush1.bf16.msra.mxu0 %v169
  %365 = vmatprep.subr.bf16.mxu0 0
  %366 = vmatpush1.bf16.msra.mxu0 %v166
  %367 = vmatprep.subr.bf16.mxu0 0
  %368 = vmatpush1.bf16.msra.mxu0 %v163
  %369 = vmatprep.subr.bf16.mxu0 0
  %370 = vmatpush1.bf16.msra.mxu0 %v160
  %371 = vmatprep.subr.bf16.mxu0 0
  %372 = vmatpush1.bf16.msra.mxu0 %v157
  %373 = vmatprep.subr.bf16.mxu0 0
  %374 = vmatpush1.bf16.msra.mxu0 %v154
  %375 = vmatprep.subr.bf16.mxu0 0
  %376 = vmatpush2.bf16.msra.mxu0 0
  %377 = vmatprep.subr.bf16.mxu0 0
  %378 = vmatpush2.bf16.msra.mxu0 0
  %379 = vmatprep.subr.bf16.mxu0 0
  %380 = vmatpush2.bf16.msra.mxu0 0
  %381 = vmatprep.subr.bf16.mxu0 0
  %382 = vmatpush2.bf16.msra.mxu0 0
  %383 = vmatprep.subr.bf16.mxu0 0
  %384 = vmatpush2.bf16.msra.mxu0 0
  %385 = vmatprep.subr.bf16.mxu0 0
  %386 = vmatpush2.bf16.msra.mxu0 0
  %387 = vmatprep.subr.bf16.mxu0 0
  %388 = vmatpush2.bf16.msra.mxu0 0
  %389 = vmatprep.subr.bf16.mxu0 0
  %390 = vmatpush2.bf16.msra.mxu0 0
  %391 = vmatprep.mubr.bf16.mxu0 0
  %392 = vmatmul.mubr.bf16.gmra.mxu0 %v317
  %v393 = vpop.f32.mrf.mxu0
  %v394 = vadd.f32 0.0, %v393
  %v395 = vpop.f32.mrf.mxu0
  %v396 = vpop.f32.mrf.mxu0
  %v397 = vpop.f32.mrf.mxu0
  %398 = vdwg.mxu0
  %v399 = vadd.f32 %v313, %v353
  %v400 = vxor.u32 %v399, 2147483648
  %v401 = vmul.f32 %v400, 1.442695
  %v402 = vpow.pop %v401
  %v403 = vadd.f32 %v402, 1.0
  %v404 = vrcp.pop %v403
  %v405 = vmul.f32 1.0, %v404
  %v406 = vadd.f32 %v314, %v355
  %v407 = vxor.u32 %v406, 2147483648
  %v408 = vmul.f32 %v407, 1.442695
  %v409 = vpow.pop %v408
  %v410 = vadd.f32 %v409, 1.0
  %v411 = vrcp.pop %v410
  %v412 = vmul.f32 1.0, %v411
  %v413 = vadd.f32 %v394, %v299
  %v414 = vmul.f32 %v405, %v413
  %v415 = vadd.f32 %v315, %v414
  %v416 = vtanh.pop %v415
  %v417 = vsub.f32 1.0, %v412
  %v418 = vmul.f32 %v417, %v416
  %v419 = vmul.f32 %v412, %v316
  %v420 = vadd.f32 %v418, %v419
  %421 = vst [vmem:[#allocation2] sm:$0xff] %v420
  %s422 = scalar_lea.vmem %s0, 24
  %v423 = vld [vmem:[%s422] sm:$0xff]
  %v424 = vld [vmem:[%s422 + $0x8] sm:$0xf]
  %v425 = vunpack.c.l.bf16 %v423
  %v426 = vunpack.c.h.bf16 %v423
  %v427 = vunpack.c.l.bf16 %v424
  %v428 = vld [vmem:[#allocation2] sm:$0xff]
  %v429 = vpack.c.bf16 %v428, %v428
  %430 = vmatprep.subr.bf16.mxu0 %v174
  %431 = vmatpush1.bf16.msra.mxu0 %v173
  %432 = vmatprep.subr.bf16.mxu0 %v171
  %433 = vmatpush1.bf16.msra.mxu0 %v170
  %434 = vmatprep.subr.bf16.mxu0 %v168
  %435 = vmatpush1.bf16.msra.mxu0 %v167
  %436 = vmatprep.subr.bf16.mxu0 %v165
  %437 = vmatpush1.bf16.msra.mxu0 %v164
  %438 = vmatprep.subr.bf16.mxu0 %v162
  %439 = vmatpush1.bf16.msra.mxu0 %v161
  %440 = vmatprep.subr.bf16.mxu0 %v159
  %441 = vmatpush1.bf16.msra.mxu0 %v158
  %442 = vmatprep.subr.bf16.mxu0 %v156
  %443 = vmatpush1.bf16.msra.mxu0 %v155
  %444 = vmatprep.subr.bf16.mxu0 %v153
  %445 = vmatpush1.bf16.msra.mxu0 %v152
  %446 = vmatprep.subr.bf16.mxu0 0
  %447 = vmatpush2.bf16.msra.mxu0 0
  %448 = vmatprep.subr.bf16.mxu0 0
  %449 = vmatpush2.bf16.msra.mxu0 0
  %450 = vmatprep.subr.bf16.mxu0 0
  %451 = vmatpush2.bf16.msra.mxu0 0
  %452 = vmatprep.subr.bf16.mxu0 0
  %453 = vmatpush2.bf16.msra.mxu0 0
  %454 = vmatprep.subr.bf16.mxu0 0
  %455 = vmatpush2.bf16.msra.mxu0 0
  %456 = vmatprep.subr.bf16.mxu0 0
  %457 = vmatpush2.bf16.msra.mxu0 0
  %458 = vmatprep.subr.bf16.mxu0 0
  %459 = vmatpush2.bf16.msra.mxu0 0
  %460 = vmatprep.subr.bf16.mxu0 0
  %461 = vmatpush2.bf16.msra.mxu0 0
  %462 = vmatprep.mubr.bf16.mxu0 0
  %463 = vmatmul.mubr.bf16.gmra.mxu0 %v429
  %v464 = vpop.f32.mrf.mxu0
  %v465 = vadd.f32 0.0, %v464
  %v466 = vpop.f32.mrf.mxu0
  %v467 = vadd.f32 0.0, %v466
  %v468 = vpop.f32.mrf.mxu0
  %v469 = vpop.f32.mrf.mxu0
  %470 = vdwg.mxu0
  %471 = vmatprep.subr.bf16.mxu0 0
  %472 = vmatpush1.bf16.msra.mxu0 %v175
  %473 = vmatprep.subr.bf16.mxu0 0
  %474 = vmatpush1.bf16.msra.mxu0 %v172
  %475 = vmatprep.subr.bf16.mxu0 0
  %476 = vmatpush1.bf16.msra.mxu0 %v169
  %477 = vmatprep.subr.bf16.mxu0 0
  %478 = vmatpush1.bf16.msra.mxu0 %v166
  %479 = vmatprep.subr.bf16.mxu0 0
  %480 = vmatpush1.bf16.msra.mxu0 %v163
  %481 = vmatprep.subr.bf16.mxu0 0
  %482 = vmatpush1.bf16.msra.mxu0 %v160
  %483 = vmatprep.subr.bf16.mxu0 0
  %484 = vmatpush1.bf16.msra.mxu0 %v157
  %485 = vmatprep.subr.bf16.mxu0 0
  %486 = vmatpush1.bf16.msra.mxu0 %v154
  %487 = vmatprep.subr.bf16.mxu0 0
  %488 = vmatpush2.bf16.msra.mxu0 0
  %489 = vmatprep.subr.bf16.mxu0 0
  %490 = vmatpush2.bf16.msra.mxu0 0
  %491 = vmatprep.subr.bf16.mxu0 0
  %492 = vmatpush2.bf16.msra.mxu0 0
  %493 = vmatprep.subr.bf16.mxu0 0
  %494 = vmatpush2.bf16.msra.mxu0 0
  %495 = vmatprep.subr.bf16.mxu0 0
  %496 = vmatpush2.bf16.msra.mxu0 0
  %497 = vmatprep.subr.bf16.mxu0 0
  %498 = vmatpush2.bf16.msra.mxu0 0
  %499 = vmatprep.subr.bf16.mxu0 0
  %500 = vmatpush2.bf16.msra.mxu0 0
  %501 = vmatprep.subr.bf16.mxu0 0
  %502 = vmatpush2.bf16.msra.mxu0 0
  %503 = vmatprep.mubr.bf16.mxu0 0
  %504 = vmatmul.mubr.bf16.gmra.mxu0 %v429
  %v505 = vpop.f32.mrf.mxu0
  %v506 = vadd.f32 0.0, %v505
  %v507 = vpop.f32.mrf.mxu0
  %v508 = vpop.f32.mrf.mxu0
  %v509 = vpop.f32.mrf.mxu0
  %510 = vdwg.mxu0
  %v511 = vadd.f32 %v425, %v465
  %v512 = vxor.u32 %v511, 2147483648
  %v513 = vmul.f32 %v512, 1.442695
  %v514 = vpow.pop %v513
  %v515 = vadd.f32 %v514, 1.0
  %v516 = vrcp.pop %v515
  %v517 = vmul.f32 1.0, %v516
  %v518 = vadd.f32 %v426, %v467
  %v519 = vxor.u32 %v518, 2147483648
  %v520 = vmul.f32 %v519, 1.442695
  %v521 = vpow.pop %v520
  %v522 = vadd.f32 %v521, 1.0
  %v523 = vrcp.pop %v522
  %v524 = vmul.f32 1.0, %v523
  %v525 = vadd.f32 %v506, %v299
  %v526 = vmul.f32 %v517, %v525
  %v527 = vadd.f32 %v427, %v526
  %v528 = vtanh.pop %v527
  %v529 = vsub.f32 1.0, %v524
  %v530 = vmul.f32 %v529, %v528
  %v531 = vmul.f32 %v524, %v428
  %v532 = vadd.f32 %v530, %v531
  %533 = vst [vmem:[#allocation2] sm:$0xff] %v532
  %s534 = scalar_lea.vmem %s0, 36
  %v535 = vld [vmem:[%s534] sm:$0xff]
  %v536 = vld [vmem:[%s534 + $0x8] sm:$0xf]
  %v537 = vunpack.c.l.bf16 %v535
  %v538 = vunpack.c.h.bf16 %v535
  %v539 = vunpack.c.l.bf16 %v536
  %v540 = vld [vmem:[#allocation2] sm:$0xff]
  %v541 = vpack.c.bf16 %v540, %v540
  %542 = vmatprep.subr.bf16.mxu0 %v174
  %543 = vmatpush1.bf16.msra.mxu0 %v173
  %544 = vmatprep.subr.bf16.mxu0 %v171
  %545 = vmatpush1.bf16.msra.mxu0 %v170
  %546 = vmatprep.subr.bf16.mxu0 %v168
  %547 = vmatpush1.bf16.msra.mxu0 %v167
  %548 = vmatprep.subr.bf16.mxu0 %v165
  %549 = vmatpush1.bf16.msra.mxu0 %v164
  %550 = vmatprep.subr.bf16.mxu0 %v162
  %551 = vmatpush1.bf16.msra.mxu0 %v161
  %552 = vmatprep.subr.bf16.mxu0 %v159
  %553 = vmatpush1.bf16.msra.mxu0 %v158
  %554 = vmatprep.subr.bf16.mxu0 %v156
  %555 = vmatpush1.bf16.msra.mxu0 %v155
  %556 = vmatprep.subr.bf16.mxu0 %v153
  %557 = vmatpush1.bf16.msra.mxu0 %v152
  %558 = vmatprep.subr.bf16.mxu0 0
  %559 = vmatpush2.bf16.msra.mxu0 0
  %560 = vmatprep.subr.bf16.mxu0 0
  %561 = vmatpush2.bf16.msra.mxu0 0
  %562 = vmatprep.subr.bf16.mxu0 0
  %563 = vmatpush2.bf16.msra.mxu0 0
  %564 = vmatprep.subr.bf16.mxu0 0
  %565 = vmatpush2.bf16.msra.mxu0 0
  %566 = vmatprep.subr.bf16.mxu0 0
  %567 = vmatpush2.bf16.msra.mxu0 0
  %568 = vmatprep.subr.bf16.mxu0 0
  %569 = vmatpush2.bf16.msra.mxu0 0
  %570 = vmatprep.subr.bf16.mxu0 0
  %571 = vmatpush2.bf16.msra.mxu0 0
  %572 = vmatprep.subr.bf16.mxu0 0
  %573 = vmatpush2.bf16.msra.mxu0 0
  %574 = vmatprep.mubr.bf16.mxu0 0
  %575 = vmatmul.mubr.bf16.gmra.mxu0 %v541
  %v576 = vpop.f32.mrf.mxu0
  %v577 = vadd.f32 0.0, %v576
  %v578 = vpop.f32.mrf.mxu0
  %v579 = vadd.f32 0.0, %v578
  %v580 = vpop.f32.mrf.mxu0
  %v581 = vpop.f32.mrf.mxu0
  %582 = vdwg.mxu0
  %583 = vmatprep.subr.bf16.mxu0 0
  %584 = vmatpush1.bf16.msra.mxu0 %v175
  %585 = vmatprep.subr.bf16.mxu0 0
  %586 = vmatpush1.bf16.msra.mxu0 %v172
  %587 = vmatprep.subr.bf16.mxu0 0
  %588 = vmatpush1.bf16.msra.mxu0 %v169
  %589 = vmatprep.subr.bf16.mxu0 0
  %590 = vmatpush1.bf16.msra.mxu0 %v166
  %591 = vmatprep.subr.bf16.mxu0 0
  %592 = vmatpush1.bf16.msra.mxu0 %v163
  %593 = vmatprep.subr.bf16.mxu0 0
  %594 = vmatpush1.bf16.msra.mxu0 %v160
  %595 = vmatprep.subr.bf16.mxu0 0
  %596 = vmatpush1.bf16.msra.mxu0 %v157
  %597 = vmatprep.subr.bf16.mxu0 0
  %598 = vmatpush1.bf16.msra.mxu0 %v154
  %599 = vmatprep.subr.bf16.mxu0 0
  %600 = vmatpush2.bf16.msra.mxu0 0
  %601 = vmatprep.subr.bf16.mxu0 0
  %602 = vmatpush2.bf16.msra.mxu0 0
  %603 = vmatprep.subr.bf16.mxu0 0
  %604 = vmatpush2.bf16.msra.mxu0 0
  %605 = vmatprep.subr.bf16.mxu0 0
  %606 = vmatpush2.bf16.msra.mxu0 0
  %607 = vmatprep.subr.bf16.mxu0 0
  %608 = vmatpush2.bf16.msra.mxu0 0
  %609 = vmatprep.subr.bf16.mxu0 0
  %610 = vmatpush2.bf16.msra.mxu0 0
  %611 = vmatprep.subr.bf16.mxu0 0
  %612 = vmatpush2.bf16.msra.mxu0 0
  %613 = vmatprep.subr.bf16.mxu0 0
  %614 = vmatpush2.bf16.msra.mxu0 0
  %615 = vmatprep.mubr.bf16.mxu0 0
  %616 = vmatmul.mubr.bf16.gmra.mxu0 %v541
  %v617 = vpop.f32.mrf.mxu0
  %v618 = vadd.f32 0.0, %v617
  %v619 = vpop.f32.mrf.mxu0
  %v620 = vpop.f32.mrf.mxu0
  %v621 = vpop.f32.mrf.mxu0
  %622 = vdwg.mxu0
  %v623 = vadd.f32 %v537, %v577
  %v624 = vxor.u32 %v623, 2147483648
  %v625 = vmul.f32 %v624, 1.442695
  %v626 = vpow.pop %v625
  %v627 = vadd.f32 %v626, 1.0
  %v628 = vrcp.pop %v627
  %v629 = vmul.f32 1.0, %v628
  %v630 = vadd.f32 %v538, %v579
  %v631 = vxor.u32 %v630, 2147483648
  %v632 = vmul.f32 %v631, 1.442695
  %v633 = vpow.pop %v632
  %v634 = vadd.f32 %v633, 1.0
  %v635 = vrcp.pop %v634
  %v636 = vmul.f32 1.0, %v635
  %v637 = vadd.f32 %v618, %v299
  %v638 = vmul.f32 %v629, %v637
  %v639 = vadd.f32 %v539, %v638
  %v640 = vtanh.pop %v639
  %v641 = vsub.f32 1.0, %v636
  %v642 = vmul.f32 %v641, %v640
  %v643 = vmul.f32 %v636, %v540
  %v644 = vadd.f32 %v642, %v643
  %645 = vst [vmem:[#allocation2] sm:$0xff] %v644
  %s646 = scalar_lea.vmem %s0, 48
  %v647 = vld [vmem:[%s646] sm:$0xff]
  %v648 = vld [vmem:[%s646 + $0x8] sm:$0xf]
  %v649 = vunpack.c.l.bf16 %v647
  %v650 = vunpack.c.h.bf16 %v647
  %v651 = vunpack.c.l.bf16 %v648
  %v652 = vld [vmem:[#allocation2] sm:$0xff]
  %v653 = vpack.c.bf16 %v652, %v652
  %654 = vmatprep.subr.bf16.mxu0 %v174
  %655 = vmatpush1.bf16.msra.mxu0 %v173
  %656 = vmatprep.subr.bf16.mxu0 %v171
  %657 = vmatpush1.bf16.msra.mxu0 %v170
  %658 = vmatprep.subr.bf16.mxu0 %v168
  %659 = vmatpush1.bf16.msra.mxu0 %v167
  %660 = vmatprep.subr.bf16.mxu0 %v165
  %661 = vmatpush1.bf16.msra.mxu0 %v164
  %662 = vmatprep.subr.bf16.mxu0 %v162
  %663 = vmatpush1.bf16.msra.mxu0 %v161
  %664 = vmatprep.subr.bf16.mxu0 %v159
  %665 = vmatpush1.bf16.msra.mxu0 %v158
  %666 = vmatprep.subr.bf16.mxu0 %v156
  %667 = vmatpush1.bf16.msra.mxu0 %v155
  %668 = vmatprep.subr.bf16.mxu0 %v153
  %669 = vmatpush1.bf16.msra.mxu0 %v152
  %670 = vmatprep.subr.bf16.mxu0 0
  %671 = vmatpush2.bf16.msra.mxu0 0
  %672 = vmatprep.subr.bf16.mxu0 0
  %673 = vmatpush2.bf16.msra.mxu0 0
  %674 = vmatprep.subr.bf16.mxu0 0
  %675 = vmatpush2.bf16.msra.mxu0 0
  %676 = vmatprep.subr.bf16.mxu0 0
  %677 = vmatpush2.bf16.msra.mxu0 0
  %678 = vmatprep.subr.bf16.mxu0 0
  %679 = vmatpush2.bf16.msra.mxu0 0
  %680 = vmatprep.subr.bf16.mxu0 0
  %681 = vmatpush2.bf16.msra.mxu0 0
  %682 = vmatprep.subr.bf16.mxu0 0
  %683 = vmatpush2.bf16.msra.mxu0 0
  %684 = vmatprep.subr.bf16.mxu0 0
  %685 = vmatpush2.bf16.msra.mxu0 0
  %686 = vmatprep.mubr.bf16.mxu0 0
  %687 = vmatmul.mubr.bf16.gmra.mxu0 %v653
  %v688 = vpop.f32.mrf.mxu0
  %v689 = vadd.f32 0.0, %v688
  %v690 = vpop.f32.mrf.mxu0
  %v691 = vadd.f32 0.0, %v690
  %v692 = vpop.f32.mrf.mxu0
  %v693 = vpop.f32.mrf.mxu0
  %694 = vdwg.mxu0
  %695 = vmatprep.subr.bf16.mxu0 0
  %696 = vmatpush1.bf16.msra.mxu0 %v175
  %697 = vmatprep.subr.bf16.mxu0 0
  %698 = vmatpush1.bf16.msra.mxu0 %v172
  %699 = vmatprep.subr.bf16.mxu0 0
  %700 = vmatpush1.bf16.msra.mxu0 %v169
  %701 = vmatprep.subr.bf16.mxu0 0
  %702 = vmatpush1.bf16.msra.mxu0 %v166
  %703 = vmatprep.subr.bf16.mxu0 0
  %704 = vmatpush1.bf16.msra.mxu0 %v163
  %705 = vmatprep.subr.bf16.mxu0 0
  %706 = vmatpush1.bf16.msra.mxu0 %v160
  %707 = vmatprep.subr.bf16.mxu0 0
  %708 = vmatpush1.bf16.msra.mxu0 %v157
  %709 = vmatprep.subr.bf16.mxu0 0
  %710 = vmatpush1.bf16.msra.mxu0 %v154
  %711 = vmatprep.subr.bf16.mxu0 0
  %712 = vmatpush2.bf16.msra.mxu0 0
  %713 = vmatprep.subr.bf16.mxu0 0
  %714 = vmatpush2.bf16.msra.mxu0 0
  %715 = vmatprep.subr.bf16.mxu0 0
  %716 = vmatpush2.bf16.msra.mxu0 0
  %717 = vmatprep.subr.bf16.mxu0 0
  %718 = vmatpush2.bf16.msra.mxu0 0
  %719 = vmatprep.subr.bf16.mxu0 0
  %720 = vmatpush2.bf16.msra.mxu0 0
  %721 = vmatprep.subr.bf16.mxu0 0
  %722 = vmatpush2.bf16.msra.mxu0 0
  %723 = vmatprep.subr.bf16.mxu0 0
  %724 = vmatpush2.bf16.msra.mxu0 0
  %725 = vmatprep.subr.bf16.mxu0 0
  %726 = vmatpush2.bf16.msra.mxu0 0
  %727 = vmatprep.mubr.bf16.mxu0 0
  %728 = vmatmul.mubr.bf16.gmra.mxu0 %v653
  %v729 = vpop.f32.mrf.mxu0
  %v730 = vadd.f32 0.0, %v729
  %v731 = vpop.f32.mrf.mxu0
  %v732 = vpop.f32.mrf.mxu0
  %v733 = vpop.f32.mrf.mxu0
  %734 = vdwg.mxu0
  %v735 = vadd.f32 %v649, %v689
  %v736 = vxor.u32 %v735, 2147483648
  %v737 = vmul.f32 %v736, 1.442695
  %v738 = vpow.pop %v737
  %v739 = vadd.f32 %v738, 1.0
  %v740 = vrcp.pop %v739
  %v741 = vmul.f32 1.0, %v740
  %v742 = vadd.f32 %v650, %v691
  %v743 = vxor.u32 %v742, 2147483648
  %v744 = vmul.f32 %v743, 1.442695
  %v745 = vpow.pop %v744
  %v746 = vadd.f32 %v745, 1.0
  %v747 = vrcp.pop %v746
  %v748 = vmul.f32 1.0, %v747
  %v749 = vadd.f32 %v730, %v299
  %v750 = vmul.f32 %v741, %v749
  %v751 = vadd.f32 %v651, %v750
  %v752 = vtanh.pop %v751
  %v753 = vsub.f32 1.0, %v748
  %v754 = vmul.f32 %v753, %v752
  %v755 = vmul.f32 %v748, %v652
  %v756 = vadd.f32 %v754, %v755
  %757 = vst [vmem:[#allocation2] sm:$0xff] %v756
  %s758 = scalar_lea.vmem %s0, 60
  %v759 = vld [vmem:[%s758] sm:$0xff]
  %v760 = vld [vmem:[%s758 + $0x8] sm:$0xf]
  %v761 = vunpack.c.l.bf16 %v759
  %v762 = vunpack.c.h.bf16 %v759
  %v763 = vunpack.c.l.bf16 %v760
  %v764 = vld [vmem:[#allocation2] sm:$0xff]
  %v765 = vpack.c.bf16 %v764, %v764
  %766 = vmatprep.subr.bf16.mxu0 %v174
  %767 = vmatpush1.bf16.msra.mxu0 %v173
  %768 = vmatprep.subr.bf16.mxu0 %v171
  %769 = vmatpush1.bf16.msra.mxu0 %v170
  %770 = vmatprep.subr.bf16.mxu0 %v168
  %771 = vmatpush1.bf16.msra.mxu0 %v167
  %772 = vmatprep.subr.bf16.mxu0 %v165
  %773 = vmatpush1.bf16.msra.mxu0 %v164
  %774 = vmatprep.subr.bf16.mxu0 %v162
  %775 = vmatpush1.bf16.msra.mxu0 %v161
  %776 = vmatprep.subr.bf16.mxu0 %v159
  %777 = vmatpush1.bf16.msra.mxu0 %v158
  %778 = vmatprep.subr.bf16.mxu0 %v156
  %779 = vmatpush1.bf16.msra.mxu0 %v155
  %780 = vmatprep.subr.bf16.mxu0 %v153
  %781 = vmatpush1.bf16.msra.mxu0 %v152
  %782 = vmatprep.subr.bf16.mxu0 0
  %783 = vmatpush2.bf16.msra.mxu0 0
  %784 = vmatprep.subr.bf16.mxu0 0
  %785 = vmatpush2.bf16.msra.mxu0 0
  %786 = vmatprep.subr.bf16.mxu0 0
  %787 = vmatpush2.bf16.msra.mxu0 0
  %788 = vmatprep.subr.bf16.mxu0 0
  %789 = vmatpush2.bf16.msra.mxu0 0
  %790 = vmatprep.subr.bf16.mxu0 0
  %791 = vmatpush2.bf16.msra.mxu0 0
  %792 = vmatprep.subr.bf16.mxu0 0
  %793 = vmatpush2.bf16.msra.mxu0 0
  %794 = vmatprep.subr.bf16.mxu0 0
  %795 = vmatpush2.bf16.msra.mxu0 0
  %796 = vmatprep.subr.bf16.mxu0 0
  %797 = vmatpush2.bf16.msra.mxu0 0
  %798 = vmatprep.mubr.bf16.mxu0 0
  %799 = vmatmul.mubr.bf16.gmra.mxu0 %v765
  %v800 = vpop.f32.mrf.mxu0
  %v801 = vadd.f32 0.0, %v800
  %v802 = vpop.f32.mrf.mxu0
  %v803 = vadd.f32 0.0, %v802
  %v804 = vpop.f32.mrf.mxu0
  %v805 = vpop.f32.mrf.mxu0
  %806 = vdwg.mxu0
  %807 = vmatprep.subr.bf16.mxu0 0
  %808 = vmatpush1.bf16.msra.mxu0 %v175
  %809 = vmatprep.subr.bf16.mxu0 0
  %810 = vmatpush1.bf16.msra.mxu0 %v172
  %811 = vmatprep.subr.bf16.mxu0 0
  %812 = vmatpush1.bf16.msra.mxu0 %v169
  %813 = vmatprep.subr.bf16.mxu0 0
  %814 = vmatpush1.bf16.msra.mxu0 %v166
  %815 = vmatprep.subr.bf16.mxu0 0
  %816 = vmatpush1.bf16.msra.mxu0 %v163
  %817 = vmatprep.subr.bf16.mxu0 0
  %818 = vmatpush1.bf16.msra.mxu0 %v160
  %819 = vmatprep.subr.bf16.mxu0 0
  %820 = vmatpush1.bf16.msra.mxu0 %v157
  %821 = vmatprep.subr.bf16.mxu0 0
  %822 = vmatpush1.bf16.msra.mxu0 %v154
  %823 = vmatprep.subr.bf16.mxu0 0
  %824 = vmatpush2.bf16.msra.mxu0 0
  %825 = vmatprep.subr.bf16.mxu0 0
  %826 = vmatpush2.bf16.msra.mxu0 0
  %827 = vmatprep.subr.bf16.mxu0 0
  %828 = vmatpush2.bf16.msra.mxu0 0
  %829 = vmatprep.subr.bf16.mxu0 0
  %830 = vmatpush2.bf16.msra.mxu0 0
  %831 = vmatprep.subr.bf16.mxu0 0
  %832 = vmatpush2.bf16.msra.mxu0 0
  %833 = vmatprep.subr.bf16.mxu0 0
  %834 = vmatpush2.bf16.msra.mxu0 0
  %835 = vmatprep.subr.bf16.mxu0 0
  %836 = vmatpush2.bf16.msra.mxu0 0
  %837 = vmatprep.subr.bf16.mxu0 0
  %838 = vmatpush2.bf16.msra.mxu0 0
  %839 = vmatprep.mubr.bf16.mxu0 0
  %840 = vmatmul.mubr.bf16.gmra.mxu0 %v765
  %v841 = vpop.f32.mrf.mxu0
  %v842 = vadd.f32 0.0, %v841
  %v843 = vpop.f32.mrf.mxu0
  %v844 = vpop.f32.mrf.mxu0
  %v845 = vpop.f32.mrf.mxu0
  %846 = vdwg.mxu0
  %v847 = vadd.f32 %v761, %v801
  %v848 = vxor.u32 %v847, 2147483648
  %v849 = vmul.f32 %v848, 1.442695
  %v850 = vpow.pop %v849
  %v851 = vadd.f32 %v850, 1.0
  %v852 = vrcp.pop %v851
  %v853 = vmul.f32 1.0, %v852
  %v854 = vadd.f32 %v762, %v803
  %v855 = vxor.u32 %v854, 2147483648
  %v856 = vmul.f32 %v855, 1.442695
  %v857 = vpow.pop %v856
  %v858 = vadd.f32 %v857, 1.0
  %v859 = vrcp.pop %v858
  %v860 = vmul.f32 1.0, %v859
  %v861 = vadd.f32 %v842, %v299
  %v862 = vmul.f32 %v853, %v861
  %v863 = vadd.f32 %v763, %v862
  %v864 = vtanh.pop %v863
  %v865 = vsub.f32 1.0, %v860
  %v866 = vmul.f32 %v865, %v864
  %v867 = vmul.f32 %v860, %v764
  %v868 = vadd.f32 %v866, %v867
  %869 = vst [vmem:[#allocation2] sm:$0xff] %v868
  %s870 = scalar_lea.vmem %s0, 72
  %v871 = vld [vmem:[%s870] sm:$0xff]
  %v872 = vld [vmem:[%s870 + $0x8] sm:$0xf]
  %v873 = vunpack.c.l.bf16 %v871
  %v874 = vunpack.c.h.bf16 %v871
  %v875 = vunpack.c.l.bf16 %v872
  %v876 = vld [vmem:[#allocation2] sm:$0xff]
  %v877 = vpack.c.bf16 %v876, %v876
  %878 = vmatprep.subr.bf16.mxu0 %v174
  %879 = vmatpush1.bf16.msra.mxu0 %v173
  %880 = vmatprep.subr.bf16.mxu0 %v171
  %881 = vmatpush1.bf16.msra.mxu0 %v170
  %882 = vmatprep.subr.bf16.mxu0 %v168
  %883 = vmatpush1.bf16.msra.mxu0 %v167
  %884 = vmatprep.subr.bf16.mxu0 %v165
  %885 = vmatpush1.bf16.msra.mxu0 %v164
  %886 = vmatprep.subr.bf16.mxu0 %v162
  %887 = vmatpush1.bf16.msra.mxu0 %v161
  %888 = vmatprep.subr.bf16.mxu0 %v159
  %889 = vmatpush1.bf16.msra.mxu0 %v158
  %890 = vmatprep.subr.bf16.mxu0 %v156
  %891 = vmatpush1.bf16.msra.mxu0 %v155
  %892 = vmatprep.subr.bf16.mxu0 %v153
  %893 = vmatpush1.bf16.msra.mxu0 %v152
  %894 = vmatprep.subr.bf16.mxu0 0
  %895 = vmatpush2.bf16.msra.mxu0 0
  %896 = vmatprep.subr.bf16.mxu0 0
  %897 = vmatpush2.bf16.msra.mxu0 0
  %898 = vmatprep.subr.bf16.mxu0 0
  %899 = vmatpush2.bf16.msra.mxu0 0
  %900 = vmatprep.subr.bf16.mxu0 0
  %901 = vmatpush2.bf16.msra.mxu0 0
  %902 = vmatprep.subr.bf16.mxu0 0
  %903 = vmatpush2.bf16.msra.mxu0 0
  %904 = vmatprep.subr.bf16.mxu0 0
  %905 = vmatpush2.bf16.msra.mxu0 0
  %906 = vmatprep.subr.bf16.mxu0 0
  %907 = vmatpush2.bf16.msra.mxu0 0
  %908 = vmatprep.subr.bf16.mxu0 0
  %909 = vmatpush2.bf16.msra.mxu0 0
  %910 = vmatprep.mubr.bf16.mxu0 0
  %911 = vmatmul.mubr.bf16.gmra.mxu0 %v877
  %v912 = vpop.f32.mrf.mxu0
  %v913 = vadd.f32 0.0, %v912
  %v914 = vpop.f32.mrf.mxu0
  %v915 = vadd.f32 0.0, %v914
  %v916 = vpop.f32.mrf.mxu0
  %v917 = vpop.f32.mrf.mxu0
  %918 = vdwg.mxu0
  %919 = vmatprep.subr.bf16.mxu0 0
  %920 = vmatpush1.bf16.msra.mxu0 %v175
  %921 = vmatprep.subr.bf16.mxu0 0
  %922 = vmatpush1.bf16.msra.mxu0 %v172
  %923 = vmatprep.subr.bf16.mxu0 0
  %924 = vmatpush1.bf16.msra.mxu0 %v169
  %925 = vmatprep.subr.bf16.mxu0 0
  %926 = vmatpush1.bf16.msra.mxu0 %v166
  %927 = vmatprep.subr.bf16.mxu0 0
  %928 = vmatpush1.bf16.msra.mxu0 %v163
  %929 = vmatprep.subr.bf16.mxu0 0
  %930 = vmatpush1.bf16.msra.mxu0 %v160
  %931 = vmatprep.subr.bf16.mxu0 0
  %932 = vmatpush1.bf16.msra.mxu0 %v157
  %933 = vmatprep.subr.bf16.mxu0 0
  %934 = vmatpush1.bf16.msra.mxu0 %v154
  %935 = vmatprep.subr.bf16.mxu0 0
  %936 = vmatpush2.bf16.msra.mxu0 0
  %937 = vmatprep.subr.bf16.mxu0 0
  %938 = vmatpush2.bf16.msra.mxu0 0
  %939 = vmatprep.subr.bf16.mxu0 0
  %940 = vmatpush2.bf16.msra.mxu0 0
  %941 = vmatprep.subr.bf16.mxu0 0
  %942 = vmatpush2.bf16.msra.mxu0 0
  %943 = vmatprep.subr.bf16.mxu0 0
  %944 = vmatpush2.bf16.msra.mxu0 0
  %945 = vmatprep.subr.bf16.mxu0 0
  %946 = vmatpush2.bf16.msra.mxu0 0
  %947 = vmatprep.subr.bf16.mxu0 0
  %948 = vmatpush2.bf16.msra.mxu0 0
  %949 = vmatprep.subr.bf16.mxu0 0
  %950 = vmatpush2.bf16.msra.mxu0 0
  %951 = vmatprep.mubr.bf16.mxu0 0
  %952 = vmatmul.mubr.bf16.gmra.mxu0 %v877
  %v953 = vpop.f32.mrf.mxu0
  %v954 = vadd.f32 0.0, %v953
  %v955 = vpop.f32.mrf.mxu0
  %v956 = vpop.f32.mrf.mxu0
  %v957 = vpop.f32.mrf.mxu0
  %958 = vdwg.mxu0
  %v959 = vadd.f32 %v873, %v913
  %v960 = vxor.u32 %v959, 2147483648
  %v961 = vmul.f32 %v960, 1.442695
  %v962 = vpow.pop %v961
  %v963 = vadd.f32 %v962, 1.0
  %v964 = vrcp.pop %v963
  %v965 = vmul.f32 1.0, %v964
  %v966 = vadd.f32 %v874, %v915
  %v967 = vxor.u32 %v966, 2147483648
  %v968 = vmul.f32 %v967, 1.442695
  %v969 = vpow.pop %v968
  %v970 = vadd.f32 %v969, 1.0
  %v971 = vrcp.pop %v970
  %v972 = vmul.f32 1.0, %v971
  %v973 = vadd.f32 %v954, %v299
  %v974 = vmul.f32 %v965, %v973
  %v975 = vadd.f32 %v875, %v974
  %v976 = vtanh.pop %v975
  %v977 = vsub.f32 1.0, %v972
  %v978 = vmul.f32 %v977, %v976
  %v979 = vmul.f32 %v972, %v876
  %v980 = vadd.f32 %v978, %v979
  %981 = vst [vmem:[#allocation2] sm:$0xff] %v980
  %s982 = scalar_lea.vmem %s0, 84
  %v983 = vld [vmem:[%s982] sm:$0xff]
  %v984 = vld [vmem:[%s982 + $0x8] sm:$0xf]
  %v985 = vunpack.c.l.bf16 %v983
  %v986 = vunpack.c.h.bf16 %v983
  %v987 = vunpack.c.l.bf16 %v984
  %v988 = vld [vmem:[#allocation2] sm:$0xff]
  %v989 = vpack.c.bf16 %v988, %v988
  %990 = vmatprep.subr.bf16.mxu0 %v174
  %991 = vmatpush1.bf16.msra.mxu0 %v173
  %992 = vmatprep.subr.bf16.mxu0 %v171
  %993 = vmatpush1.bf16.msra.mxu0 %v170
  %994 = vmatprep.subr.bf16.mxu0 %v168
  %995 = vmatpush1.bf16.msra.mxu0 %v167
  %996 = vmatprep.subr.bf16.mxu0 %v165
  %997 = vmatpush1.bf16.msra.mxu0 %v164
  %998 = vmatprep.subr.bf16.mxu0 %v162
  %999 = vmatpush1.bf16.msra.mxu0 %v161
  %1000 = vmatprep.subr.bf16.mxu0 %v159
  %1001 = vmatpush1.bf16.msra.mxu0 %v158
  %1002 = vmatprep.subr.bf16.mxu0 %v156
  %1003 = vmatpush1.bf16.msra.mxu0 %v155
  %1004 = vmatprep.subr.bf16.mxu0 %v153
  %1005 = vmatpush1.bf16.msra.mxu0 %v152
  %1006 = vmatprep.subr.bf16.mxu0 0
  %1007 = vmatpush2.bf16.msra.mxu0 0
  %1008 = vmatprep.subr.bf16.mxu0 0
  %1009 = vmatpush2.bf16.msra.mxu0 0
  %1010 = vmatprep.subr.bf16.mxu0 0
  %1011 = vmatpush2.bf16.msra.mxu0 0
  %1012 = vmatprep.subr.bf16.mxu0 0
  %1013 = vmatpush2.bf16.msra.mxu0 0
  %1014 = vmatprep.subr.bf16.mxu0 0
  %1015 = vmatpush2.bf16.msra.mxu0 0
  %1016 = vmatprep.subr.bf16.mxu0 0
  %1017 = vmatpush2.bf16.msra.mxu0 0
  %1018 = vmatprep.subr.bf16.mxu0 0
  %1019 = vmatpush2.bf16.msra.mxu0 0
  %1020 = vmatprep.subr.bf16.mxu0 0
  %1021 = vmatpush2.bf16.msra.mxu0 0
  %1022 = vmatprep.mubr.bf16.mxu0 0
  %1023 = vmatmul.mubr.bf16.gmra.mxu0 %v989
  %v1024 = vpop.f32.mrf.mxu0
  %v1025 = vadd.f32 0.0, %v1024
  %v1026 = vpop.f32.mrf.mxu0
  %v1027 = vadd.f32 0.0, %v1026
  %v1028 = vpop.f32.mrf.mxu0
  %v1029 = vpop.f32.mrf.mxu0
  %1030 = vdwg.mxu0
  %1031 = vmatprep.subr.bf16.mxu0 0
  %1032 = vmatpush1.bf16.msra.mxu0 %v175
  %1033 = vmatprep.subr.bf16.mxu0 0
  %1034 = vmatpush1.bf16.msra.mxu0 %v172
  %1035 = vmatprep.subr.bf16.mxu0 0
  %1036 = vmatpush1.bf16.msra.mxu0 %v169
  %1037 = vmatprep.subr.bf16.mxu0 0
  %1038 = vmatpush1.bf16.msra.mxu0 %v166
  %1039 = vmatprep.subr.bf16.mxu0 0
  %1040 = vmatpush1.bf16.msra.mxu0 %v163
  %1041 = vmatprep.subr.bf16.mxu0 0
  %1042 = vmatpush1.bf16.msra.mxu0 %v160
  %1043 = vmatprep.subr.bf16.mxu0 0
  %1044 = vmatpush1.bf16.msra.mxu0 %v157
  %1045 = vmatprep.subr.bf16.mxu0 0
  %1046 = vmatpush1.bf16.msra.mxu0 %v154
  %1047 = vmatprep.subr.bf16.mxu0 0
  %1048 = vmatpush2.bf16.msra.mxu0 0
  %1049 = vmatprep.subr.bf16.mxu0 0
  %1050 = vmatpush2.bf16.msra.mxu0 0
  %1051 = vmatprep.subr.bf16.mxu0 0
  %1052 = vmatpush2.bf16.msra.mxu0 0
  %1053 = vmatprep.subr.bf16.mxu0 0
  %1054 = vmatpush2.bf16.msra.mxu0 0
  %1055 = vmatprep.subr.bf16.mxu0 0
  %1056 = vmatpush2.bf16.msra.mxu0 0
  %1057 = vmatprep.subr.bf16.mxu0 0
  %1058 = vmatpush2.bf16.msra.mxu0 0
  %1059 = vmatprep.subr.bf16.mxu0 0
  %1060 = vmatpush2.bf16.msra.mxu0 0
  %1061 = vmatprep.subr.bf16.mxu0 0
  %1062 = vmatpush2.bf16.msra.mxu0 0
  %1063 = vmatprep.mubr.bf16.mxu0 0
  %1064 = vmatmul.mubr.bf16.gmra.mxu0 %v989
  %v1065 = vpop.f32.mrf.mxu0
  %v1066 = vadd.f32 0.0, %v1065
  %v1067 = vpop.f32.mrf.mxu0
  %v1068 = vpop.f32.mrf.mxu0
  %v1069 = vpop.f32.mrf.mxu0
  %1070 = vdwg.mxu0
  %v1071 = vadd.f32 %v985, %v1025
  %v1072 = vxor.u32 %v1071, 2147483648
  %v1073 = vmul.f32 %v1072, 1.442695
  %v1074 = vpow.pop %v1073
  %v1075 = vadd.f32 %v1074, 1.0
  %v1076 = vrcp.pop %v1075
  %v1077 = vmul.f32 1.0, %v1076
  %v1078 = vadd.f32 %v986, %v1027
  %v1079 = vxor.u32 %v1078, 2147483648
  %v1080 = vmul.f32 %v1079, 1.442695
  %v1081 = vpow.pop %v1080
  %v1082 = vadd.f32 %v1081, 1.0
  %v1083 = vrcp.pop %v1082
  %v1084 = vmul.f32 1.0, %v1083
  %v1085 = vadd.f32 %v1066, %v299
  %v1086 = vmul.f32 %v1077, %v1085
  %v1087 = vadd.f32 %v987, %v1086
  %v1088 = vtanh.pop %v1087
  %v1089 = vsub.f32 1.0, %v1084
  %v1090 = vmul.f32 %v1089, %v1088
  %v1091 = vmul.f32 %v1084, %v988
  %v1092 = vadd.f32 %v1090, %v1091
  %1093 = vst [vmem:[#allocation2] sm:$0xff] %v1092
  // Predicated region
  $region30: #{encoder_forward.1} parent=0 // pred_check
    %p1094 = pneg %p24
  $region31: #{encoder_forward.1} parent=0 // pred_check_branch
    %1096 = sbr.rel (%p1094) target = $region33
  $region32: #{encoder_forward.1} parent=0 // pred_region
    %v1097 = vld [vmem:[#allocation2] sm:$0xff]
    %v1098 = vpack.c.bf16 %v1097, %v1097
    %v1099 = vld [vmem:[%s3] sm:$0xff]
    %v1100 = vld [vmem:[%s3 + $0x8] sm:$0xff]
    %v1101 = vld [vmem:[%s3 + $0x10] sm:$0xff]
    %v1102 = vld [vmem:[%s3 + $0x18] sm:$0xff]
    %v1103 = vld [vmem:[%s3 + $0x20] sm:$0xff]
    %v1104 = vld [vmem:[%s3 + $0x28] sm:$0xff]
    %v1105 = vld [vmem:[%s3 + $0x30] sm:$0xff]
    %v1106 = vld [vmem:[%s3 + $0x38] sm:$0xff]
    %v1107 = vld [vmem:[%s3 + $0x40] sm:$0xff]
    %v1108 = vld [vmem:[%s3 + $0x48] sm:$0xff]
    %v1109 = vld [vmem:[%s3 + $0x50] sm:$0xff]
    %v1110 = vld [vmem:[%s3 + $0x58] sm:$0xff]
    %v1111 = vld [vmem:[%s3 + $0x60] sm:$0xff]
    %v1112 = vld [vmem:[%s3 + $0x68] sm:$0xff]
    %v1113 = vld [vmem:[%s3 + $0x70] sm:$0xff]
    %v1114 = vld [vmem:[%s3 + $0x78] sm:$0xff]
    %v1115 = vld [vmem:[%s4] sm:$0x3]
    %v1117 = vlaneseq
    %v1118 = vshrl.u32 %v1117, 7
    %v1119 = vsub.s32 0, %v1118
    %v1120 = vrot.slane %v1115, %v1119
    %v1121 = vlaneseq
    %v1122 = vshrl.u32 %v1121, 7
    %v1123 = vsub.s32 1, %v1122
    %v1124 = vrot.slane %v1115, %v1123
    %v1143 = vunpack.c.l.b16 %v1099
    %v1144 = vunpack.c.h.b16 %v1099
    %v1145 = vunpack.c.l.b16 %v1100
    %v1146 = vunpack.c.h.b16 %v1100
    %v1147 = vunpack.c.l.b16 %v1101
    %v1148 = vunpack.c.h.b16 %v1101
    %v1149 = vunpack.c.l.b16 %v1102
    %v1150 = vunpack.c.h.b16 %v1102
    %v1151 = vunpack.c.l.b16 %v1103
    %v1152 = vunpack.c.h.b16 %v1103
    %v1153 = vunpack.c.l.b16 %v1104
    %v1154 = vunpack.c.h.b16 %v1104
    %v1155 = vunpack.c.l.b16 %v1105
    %v1156 = vunpack.c.h.b16 %v1105
    %v1157 = vunpack.c.l.b16 %v1106
    %v1158 = vunpack.c.h.b16 %v1106
    %v1159 = vunpack.c.l.b16 %v1107
    %v1160 = vunpack.c.h.b16 %v1107
    %v1161 = vunpack.c.l.b16 %v1108
    %v1162 = vunpack.c.h.b16 %v1108
    %v1163 = vunpack.c.l.b16 %v1109
    %v1164 = vunpack.c.h.b16 %v1109
    %v1165 = vunpack.c.l.b16 %v1110
    %v1166 = vunpack.c.h.b16 %v1110
    %v1167 = vunpack.c.l.b16 %v1111
    %v1168 = vunpack.c.h.b16 %v1111
    %v1169 = vunpack.c.l.b16 %v1112
    %v1170 = vunpack.c.h.b16 %v1112
    %v1171 = vunpack.c.l.b16 %v1113
    %v1172 = vunpack.c.h.b16 %v1113
    %v1173 = vunpack.c.l.b16 %v1114
    %v1174 = vunpack.c.h.b16 %v1114
    %v1175 = vpack.c.b16 %v1145, %v1143
    %v1176 = vpack.c.b16 %v1146, %v1144
    %v1177 = vpack.c.b16 %v1149, %v1147
    %v1178 = vpack.c.b16 %v1150, %v1148
    %v1179 = vpack.c.b16 %v1153, %v1151
    %v1180 = vpack.c.b16 %v1154, %v1152
    %v1181 = vpack.c.b16 %v1157, %v1155
    %v1182 = vpack.c.b16 %v1158, %v1156
    %v1183 = vpack.c.b16 %v1161, %v1159
    %v1184 = vpack.c.b16 %v1162, %v1160
    %v1185 = vpack.c.b16 %v1165, %v1163
    %v1186 = vpack.c.b16 %v1166, %v1164
    %v1187 = vpack.c.b16 %v1169, %v1167
    %v1188 = vpack.c.b16 %v1170, %v1168
    %v1189 = vpack.c.b16 %v1173, %v1171
    %v1190 = vpack.c.b16 %v1174, %v1172
    %1207 = vmatprep.subr.bf16.mxu0 %v1190
    %1208 = vmatpush1.bf16.msra.mxu0 %v1189
    %1209 = vmatprep.subr.bf16.mxu0 %v1188
    %1210 = vmatpush1.bf16.msra.mxu0 %v1187
    %1211 = vmatprep.subr.bf16.mxu0 %v1186
    %1212 = vmatpush1.bf16.msra.mxu0 %v1185
    %1213 = vmatprep.subr.bf16.mxu0 %v1184
    %1214 = vmatpush1.bf16.msra.mxu0 %v1183
    %1215 = vmatprep.subr.bf16.mxu0 %v1182
    %1216 = vmatpush1.bf16.msra.mxu0 %v1181
    %1217 = vmatprep.subr.bf16.mxu0 %v1180
    %1218 = vmatpush1.bf16.msra.mxu0 %v1179
    %1219 = vmatprep.subr.bf16.mxu0 %v1178
    %1220 = vmatpush1.bf16.msra.mxu0 %v1177
    %1221 = vmatprep.subr.bf16.mxu0 %v1176
    %1222 = vmatpush1.bf16.msra.mxu0 %v1175
    %1223 = vmatprep.subr.bf16.mxu0 0
    %1224 = vmatpush2.bf16.msra.mxu0 0
    %1225 = vmatprep.subr.bf16.mxu0 0
    %1226 = vmatpush2.bf16.msra.mxu0 0
    %1227 = vmatprep.subr.bf16.mxu0 0
    %1228 = vmatpush2.bf16.msra.mxu0 0
    %1229 = vmatprep.subr.bf16.mxu0 0
    %1230 = vmatpush2.bf16.msra.mxu0 0
    %1231 = vmatprep.subr.bf16.mxu0 0
    %1232 = vmatpush2.bf16.msra.mxu0 0
    %1233 = vmatprep.subr.bf16.mxu0 0
    %1234 = vmatpush2.bf16.msra.mxu0 0
    %1235 = vmatprep.subr.bf16.mxu0 0
    %1236 = vmatpush2.bf16.msra.mxu0 0
    %1237 = vmatprep.subr.bf16.mxu0 0
    %1238 = vmatpush2.bf16.msra.mxu0 0
    %1239 = vmatprep.mubr.bf16.mxu0 0
    %1240 = vmatmul.mubr.bf16.gmra.mxu0 %v1098
    %v1241 = vpop.f32.mrf.mxu0
    %v1242 = vadd.f32 %v1120, %v1241
    %v1243 = vpop.f32.mrf.mxu0
    %v1244 = vadd.f32 %v1124, %v1243
    %v1245 = vpop.f32.mrf.mxu0
    %v1246 = vpop.f32.mrf.mxu0
    %1247 = vdwg.mxu0
    %v1248 = vld [vmem:[%s5] sm:$0xff]
    %v1249 = vmul.f32 %v1244, 0.5
    %v1250 = vmul.f32 %v1249, 1.442695
    %v1251 = vpow.pop %v1250
    %v1252 = vmul.f32 %v1248, %v1251
    %v1253 = vadd.f32 %v1242, %v1252
    %1254 = vst [vmem:[%s6] sm:$0xff] %v1253
    %1255 = vst [vmem:[%s6 + $0x8] sm:$0xff] %v1242
    %1256 = vst [vmem:[%s6 + $0x10] sm:$0xff] %v1244
  $region33: #{encoder_forward.1} parent=0 // pred_fallthru
    _
  // Predicated region
  $region34: #{encoder_forward.1} parent=0 // pred_check
    _
  $region35: #{encoder_forward.1} parent=0 // pred_check_branch
    %1258 = sbr.rel (0) target = $region37
  $region36: #{encoder_forward.1} parent=0 // pred_region
    _
  $region37: #{encoder_forward.1} parent=0 // pred_fallthru
    _
  // Predicated region
  $region38: #{encoder_forward.1} parent=0 // pred_check
    _
  $region39: #{encoder_forward.1} parent=0 // pred_check_branch
    %1260 = sbr.rel (0) target = $region41
  $region40: #{encoder_forward.1} parent=0 // pred_region
    _
  $region41: #{encoder_forward.1} parent=0 // pred_fallthru
    _

</llo_original>
